<compile_context>
chip_gen: v7x
topology: tpu7x:2x2x1
jax: 0.10.0
libtpu: 0.0.40
codegen_flags: <defaults>
</compile_context>

<pallas_src>
import functools

import numpy as np
import jax
import jax.numpy as jnp
from jax.experimental import pallas as pl
from jax.experimental.pallas import tpu as pltpu

H = W = 42            # hard-coded in the torch module (reshape to (C_out, 42, 42))
N_REAL = H * W        # 1764 graph nodes
N_PAD = 1792          # next multiple of 128 (and of TM)
TM = 256              # row tile of the banded A^2 -> 7 grid steps
HALO = 128            # 128-aligned halo on each side; A^2 bandwidth = 84 <= HALO
W_WIN = TM + 2 * HALO # 512-wide banded column window per row tile
N_TILES = N_PAD // TM
C_HID = 128           # hidden width of gcn1 (from the torch module)
C_PACK = 128          # padded width of packed input  (batch * in_channels  <= 128)
C_OUT_PACK = 128      # padded width of packed output (batch * out_channels <= 128)

assert TM % 128 == 0 and N_PAD % TM == 0
assert HALO >= 2 * 42      # covers the A^2 bandwidth (two grid hops = 84)


# ----------------------------------------------------------------------------
# Banded-window bookkeeping (host + traced versions must match)
# ----------------------------------------------------------------------------
def _window_start_host(t):
    """Column-window start (in elements) for row tile t. Multiple of 128."""
    return int(min(max(TM * t - HALO, 0), N_PAD - W_WIN))


def _window_start_traced(t):
    """Same formula, traced, for use inside the kernel."""
    s = jnp.clip(t * TM - HALO, 0, N_PAD - W_WIN)
    return pl.multiple_of(s, 128)


# ----------------------------------------------------------------------------
# Fused Pallas kernel: one row tile of the collapsed 2-layer GCN
#   o = A2_tile @ (X_win @ W12) + rowsum(A)_tile * (b1 @ W2) + b2
# ----------------------------------------------------------------------------
def _gcn_fused_kernel(a2_ref, x_ref, w12_ref, rs_ref, b1w2_ref, b2_ref, o_ref):
    start = _window_start_traced(pl.program_id(0))
    x_win = x_ref[pl.ds(start, W_WIN), :]                                    # (W_WIN, C_PACK)
    xw = jnp.dot(x_win, w12_ref[...], preferred_element_type=jnp.float32)    # (W_WIN, C_OUT_PACK)
    acc = jnp.dot(a2_ref[...], xw, preferred_element_type=jnp.float32)       # (TM, C_OUT_PACK)
    o_ref[...] = acc + rs_ref[...] * b1w2_ref[...] + b2_ref[...]


def _gcn_fused(a2_band, x_packed, w12_bd, rowsum, b1w2_pk, b2_pk):
    return pl.pallas_call(
        _gcn_fused_kernel,
        out_shape=jax.ShapeDtypeStruct((N_PAD, C_OUT_PACK), jnp.float32),
        grid_spec=pltpu.PrefetchScalarGridSpec(
            num_scalar_prefetch=0,
            grid=(N_TILES,),
            in_specs=[
                pl.BlockSpec((TM, W_WIN), lambda t: (t, 0)),           # banded A^2 row tile
                pl.BlockSpec((N_PAD, C_PACK), lambda t: (0, 0)),       # X packed (resident)
                pl.BlockSpec((C_PACK, C_OUT_PACK), lambda t: (0, 0)),  # block-diag W1@W2
                pl.BlockSpec((TM, 1), lambda t: (t, 0)),               # rowsum(A) tile
                pl.BlockSpec((1, C_OUT_PACK), lambda t: (0, 0)),       # packed b1@W2
                pl.BlockSpec((1, C_OUT_PACK), lambda t: (0, 0)),       # packed b2
            ],
            out_specs=pl.BlockSpec((TM, C_OUT_PACK), lambda t: (t, 0)),
        ),
        compiler_params=pltpu.CompilerParams(dimension_semantics=("parallel",)),
    )(a2_band, x_packed, w12_bd, rowsum, b1w2_pk, b2_pk)


@functools.partial(jax.jit, static_argnames=("out_channels",))
def gcn_forward(x, a2_band, w12_bd, rowsum, b1w2_pk, b2_pk, *, out_channels):
    batch, cin, hh, ww = x.shape
    n = hh * ww
    # (B, Cin, H, W) -> (B, H, W, Cin) -> (N, B*Cin); item i lives in cols [i*Cin, (i+1)*Cin)
    flat = jnp.transpose(x, (0, 2, 3, 1)).reshape(batch, n, cin)
    x_cols = jnp.transpose(flat, (1, 0, 2)).reshape(n, batch * cin)
    x_packed = jnp.zeros((N_PAD, C_PACK), jnp.float32).at[:n, : batch * cin].set(x_cols)

    h2 = _gcn_fused(a2_band, x_packed, w12_bd, rowsum, b1w2_pk, b2_pk)  # (N_PAD, C_OUT_PACK)

    out = h2[:n, : batch * out_channels].reshape(n, batch, out_channels)
    out = jnp.transpose(out, (1, 0, 2))                        # (B, N, out_channels)
    return out.reshape(batch, out_channels, hh, ww)            # raw reshape, as in torch


# ----------------------------------------------------------------------------
# Graph construction / band packing / parameter packing
# ----------------------------------------------------------------------------
def grid_adjacency_normalized(h, w):
    """Dense symmetric-normalised adjacency of a 4-connected h x w grid (+ self loops)."""
    n = h * w
    idx = np.arange(n).reshape(h, w)
    a = np.zeros((n, n), np.float32)
    s, d = idx[:, :-1].ravel(), idx[:, 1:].ravel()      # horizontal edges
    a[s, d] = 1.0
    a[d, s] = 1.0
    s, d = idx[:-1, :].ravel(), idx[1:, :].ravel()      # vertical edges
    a[s, d] = 1.0
    a[d, s] = 1.0
    a_hat = a + np.eye(n, dtype=np.float32)
    d_inv_sqrt = 1.0 / np.sqrt(a_hat.sum(axis=1))
    return a_hat * d_inv_sqrt[:, None] * d_inv_sqrt[None, :]


def band_pack(mat_pad):
    """Band-pack a padded (N_PAD, N_PAD) matrix: row tile t keeps its 512-col window."""
    band = np.zeros((N_PAD, W_WIN), np.float32)
    for t in range(N_TILES):
        s = _window_start_host(t)
        rows = slice(t * TM, (t + 1) * TM)
        band[rows, :] = mat_pad[rows, s : s + W_WIN]
        # everything outside the window must be zero (bandwidth 84 <= halo 128)
        assert not mat_pad[rows, :s].any()
        assert not mat_pad[rows, s + W_WIN :].any()
    return band


class GCNetPallas:
    """Pallas TPU implementation of the 2-layer GCNet forward pass."""

    def __init__(self, in_channels, out_channels, key):
        self.in_channels = in_channels
        self.out_channels = out_channels
        k1, k2, k3, k4 = jax.random.split(key, 4)
        # deterministic synthetic parameters (glorot-ish scale)
        self.w1 = jax.random.normal(k1, (in_channels, C_HID), jnp.float32) / np.sqrt(in_channels)
        self.b1 = 0.1 * jax.random.normal(k2, (C_HID,), jnp.float32)
        self.w2 = jax.random.normal(k3, (C_HID, out_channels), jnp.float32) / np.sqrt(C_HID)
        self.b2 = 0.1 * jax.random.normal(k4, (out_channels,), jnp.float32)

        a = grid_adjacency_normalized(H, W)
        self.a_norm = jnp.asarray(a)                     # dense, for the reference path
        a_pad = np.zeros((N_PAD, N_PAD), np.float64)
        a_pad[:N_REAL, :N_REAL] = a.astype(np.float64)
        a2_pad = (a_pad @ a_pad).astype(np.float32)      # bandwidth 84, structural zeros exact
        self.a2_band = jnp.asarray(band_pack(a2_pad))    # (N_PAD, W_WIN)
        self.rowsum = jnp.asarray(
            a_pad.sum(axis=1, dtype=np.float64).astype(np.float32).reshape(N_PAD, 1))
        self._packed_cache = {}

    def _packed_params(self, batch):
        """Block-diagonal W1@W2 / packed bias rows so the whole batch is one matmul."""
        if batch in self._packed_cache:
            return self._packed_cache[batch]
        cin, cout = self.in_channels, self.out_channels
        if batch * cin > C_PACK or batch * cout > C_OUT_PACK:
            # TODO(synk): chunk the batch if it overflows a single packed slab.
            raise ValueError("batch too large for single-slab packing")
        w1 = np.asarray(self.w1, dtype=np.float64)
        w2 = np.asarray(self.w2, dtype=np.float64)
        b1 = np.asarray(self.b1, dtype=np.float64)
        b2 = np.asarray(self.b2, dtype=np.float64)
        w12 = (w1 @ w2).astype(np.float32)               # (cin, cout)
        b1w2 = (b1 @ w2).astype(np.float32)              # (cout,)
        w12_bd = np.zeros((C_PACK, C_OUT_PACK), np.float32)
        b1w2_pk = np.zeros((1, C_OUT_PACK), np.float32)
        b2_pk = np.zeros((1, C_OUT_PACK), np.float32)
        for i in range(batch):
            w12_bd[i * cin : (i + 1) * cin, i * cout : (i + 1) * cout] = w12
            b1w2_pk[0, i * cout : (i + 1) * cout] = b1w2
            b2_pk[0, i * cout : (i + 1) * cout] = b2.astype(np.float32)
        packed = tuple(jnp.asarray(p) for p in (w12_bd, b1w2_pk, b2_pk))
        self._packed_cache[batch] = packed
        return packed

    def __call__(self, in_features):
        batch = in_features.shape[0]
        assert in_features.shape[2] == H and in_features.shape[3] == W
        w12_bd, b1w2_pk, b2_pk = self._packed_params(batch)
        return gcn_forward(in_features, self.a2_band, w12_bd, self.rowsum,
                           b1w2_pk, b2_pk, out_channels=self.out_channels)

    def reference(self, in_features):
        """Pure-JAX dense f32 reference (mirrors the torch forward per item)."""
        hi = jax.lax.Precision.HIGHEST
        outs = []
        for item in in_features:
            flat = jnp.transpose(item, (1, 2, 0)).reshape(N_REAL, self.in_channels)
            h1 = jnp.dot(self.a_norm, jnp.dot(flat, self.w1, precision=hi),
                         precision=hi) + self.b1
            h2 = jnp.dot(self.a_norm, jnp.dot(h1, self.w2, precision=hi),
                         precision=hi) + self.b2
            outs.append(h2.reshape(self.out_channels, H, W))
        return jnp.stack(outs)


if __name__ == "__main__":
    key = jax.random.PRNGKey(0)
    k_in, k_par = jax.random.split(key)

    batch, in_channels, out_channels = 2, 4, 4
    x = jax.random.normal(k_in, (batch, in_channels, H, W), jnp.float32)

    net = GCNetPallas(in_channels, out_channels, k_par)

    y = jax.block_until_ready(net(x))
    assert y.shape == (batch, out_channels, H, W), y.shape

    y_ref = jax.block_until_ready(net.reference(x))
    np.testing.assert_allclose(np.asarray(y), np.asarray(y_ref), atol=2e-3, rtol=2e-3)

    print("KERNEL_OK")
</pallas_src>

<mosaic_0001>
module attributes {stable_mosaic.version = 11 : i64} {
  func.func @_gcn_fused_kernel(%arg0: i32, %arg1: memref<256x512xf32, #tpu.memory_space<vmem>>, %arg2: memref<1792x128xf32, #tpu.memory_space<vmem>>, %arg3: memref<128x128xf32, #tpu.memory_space<vmem>>, %arg4: memref<256x1xf32, #tpu.memory_space<vmem>>, %arg5: memref<1x128xf32, #tpu.memory_space<vmem>>, %arg6: memref<1x128xf32, #tpu.memory_space<vmem>>, %arg7: memref<256x128xf32, #tpu.memory_space<vmem>>) attributes {dimension_semantics = [#tpu.dimension_semantics<parallel>], iteration_bounds = array<i64: 7>, scalar_prefetch = 0 : i64, scratch_operands = 0 : i64, tpu.core_type = #tpu.core_type<tc>, window_params = [{transform_indices = @transform_0, window_bounds = array<i64: 256, 512>}, {pipeline_mode = #tpu.pipeline_mode<synchronous>, transform_indices = @transform_1, window_bounds = array<i64: 1792, 128>}, {pipeline_mode = #tpu.pipeline_mode<synchronous>, transform_indices = @transform_2, window_bounds = array<i64: 128, 128>}, {transform_indices = @transform_3, window_bounds = array<i64: 256, 1>}, {pipeline_mode = #tpu.pipeline_mode<synchronous>, transform_indices = @transform_4, window_bounds = array<i64: 1, 128>}, {pipeline_mode = #tpu.pipeline_mode<synchronous>, transform_indices = @transform_5, window_bounds = array<i64: 1, 128>}, {transform_indices = @transform_6, window_bounds = array<i64: 256, 128>}]} {
    %c256_i32 = arith.constant 256 : i32
    %0 = arith.muli %arg0, %c256_i32 : i32
    %c128_i32 = arith.constant 128 : i32
    %1 = arith.subi %0, %c128_i32 : i32
    %c0_i32 = arith.constant 0 : i32
    %c1280_i32 = arith.constant 1280 : i32
    %2 = arith.maxsi %c0_i32, %1 : i32
    %3 = arith.minsi %c1280_i32, %2 : i32
    %4 = tpu.assume_multiple %3, 128 : i32
    %5 = arith.index_cast %4 : i32 to index
    %c0 = arith.constant 0 : index
    %6 = vector.load %arg2[%5, %c0] : memref<1792x128xf32, #tpu.memory_space<vmem>>, vector<512x128xf32>
    %c0_0 = arith.constant 0 : index
    %c0_1 = arith.constant 0 : index
    %7 = vector.load %arg3[%c0_0, %c0_1] : memref<128x128xf32, #tpu.memory_space<vmem>>, vector<128x128xf32>
    %cst = arith.constant dense<0.000000e+00> : vector<512x128xf32>
    %8 = tpu.matmul %6, %7, %cst {dimension_numbers = #tpu.dot_dimension_numbers<[1], [0], [0], [1], [0, 0, 1, 1], [], []>} : vector<512x128xf32>, vector<128x128xf32>, vector<512x128xf32> -> vector<512x128xf32>
    %c0_2 = arith.constant 0 : index
    %c0_3 = arith.constant 0 : index
    %9 = vector.load %arg1[%c0_2, %c0_3] : memref<256x512xf32, #tpu.memory_space<vmem>>, vector<256x512xf32>
    %cst_4 = arith.constant dense<0.000000e+00> : vector<256x128xf32>
    %10 = tpu.matmul %9, %8, %cst_4 {dimension_numbers = #tpu.dot_dimension_numbers<[1], [0], [0], [1], [0, 0, 1, 1], [], []>} : vector<256x512xf32>, vector<512x128xf32>, vector<256x128xf32> -> vector<256x128xf32>
    %c0_5 = arith.constant 0 : index
    %c0_6 = arith.constant 0 : index
    %11 = vector.load %arg4[%c0_5, %c0_6] : memref<256x1xf32, #tpu.memory_space<vmem>>, vector<256x1xf32>
    %c0_7 = arith.constant 0 : index
    %c0_8 = arith.constant 0 : index
    %12 = vector.load %arg5[%c0_7, %c0_8] : memref<1x128xf32, #tpu.memory_space<vmem>>, vector<1x128xf32>
    %13 = vector.broadcast %11 : vector<256x1xf32> to vector<256x128xf32>
    %14 = vector.broadcast %12 : vector<1x128xf32> to vector<256x128xf32>
    %15 = arith.mulf %13, %14 : vector<256x128xf32>
    %16 = arith.addf %10, %15 : vector<256x128xf32>
    %c0_9 = arith.constant 0 : index
    %c0_10 = arith.constant 0 : index
    %17 = vector.load %arg6[%c0_9, %c0_10] : memref<1x128xf32, #tpu.memory_space<vmem>>, vector<1x128xf32>
    %18 = vector.broadcast %17 : vector<1x128xf32> to vector<256x128xf32>
    %19 = arith.addf %16, %18 : vector<256x128xf32>
    %c0_11 = arith.constant 0 : index
    %c0_12 = arith.constant 0 : index
    %20 = vector.load %arg7[%c0_11, %c0_12] : memref<256x128xf32, #tpu.memory_space<vmem>>, vector<256x128xf32>
    tpu.vector_store %arg7[%c0_11, %c0_12], %19 {strides = array<i32>} : memref<256x128xf32, #tpu.memory_space<vmem>>, vector<256x128xf32>,
    return
  }
  func.func @transform_0(%arg0: i32) -> (i32, i32) {
    %c0_i32 = arith.constant 0 : i32
    %c0_i32_0 = arith.constant 0 : i32
    return %arg0, %c0_i32 : i32, i32
  }
  func.func @transform_1(%arg0: i32) -> (i32, i32) {
    %c0_i32 = arith.constant 0 : i32
    %c0_i32_0 = arith.constant 0 : i32
    %c0_i32_1 = arith.constant 0 : i32
    return %c0_i32, %c0_i32_0 : i32, i32
  }
  func.func @transform_2(%arg0: i32) -> (i32, i32) {
    %c0_i32 = arith.constant 0 : i32
    %c0_i32_0 = arith.constant 0 : i32
    %c0_i32_1 = arith.constant 0 : i32
    return %c0_i32, %c0_i32_0 : i32, i32
  }
  func.func @transform_3(%arg0: i32) -> (i32, i32) {
    %c0_i32 = arith.constant 0 : i32
    %c0_i32_0 = arith.constant 0 : i32
    return %arg0, %c0_i32 : i32, i32
  }
  func.func @transform_4(%arg0: i32) -> (i32, i32) {
    %c0_i32 = arith.constant 0 : i32
    %c0_i32_0 = arith.constant 0 : i32
    %c0_i32_1 = arith.constant 0 : i32
    return %c0_i32, %c0_i32_0 : i32, i32
  }
  func.func @transform_5(%arg0: i32) -> (i32, i32) {
    %c0_i32 = arith.constant 0 : i32
    %c0_i32_0 = arith.constant 0 : i32
    %c0_i32_1 = arith.constant 0 : i32
    return %c0_i32, %c0_i32_0 : i32, i32
  }
  func.func @transform_6(%arg0: i32) -> (i32, i32) {
    %c0_i32 = arith.constant 0 : i32
    %c0_i32_0 = arith.constant 0 : i32
    return %arg0, %c0_i32 : i32, i32
  }
}

</mosaic_0001>

<llo_original>
// kernel: gcn_forward.1
$region0: #{gcn_forward.1}
  #allocation0 [shape = 'u32[]', space=smem, size = 0x4, offset = 0x4, fixed_abs, tag = 'smem constant byte address 0x4 - core index']
  #allocation1 [shape = 'u32[144,128]{1,0:T(1,128)}', space=vmem, size = 0x12000, scoped, tag = 'internal scratch']
  %s0 = inlined_call_operand.vmem [shape: f32[1792,512], index: 0, kind: input, shape index: {}]
  %s1 = inlined_call_operand.vmem [shape: f32[1792,128], index: 1, kind: input, shape index: {}]
  %s2 = inlined_call_operand.vmem [shape: f32[128,128], index: 2, kind: input, shape index: {}]
  %s3 = inlined_call_operand.vmem [shape: f32[1792,1], index: 3, kind: input, shape index: {}]
  %s4 = inlined_call_operand.vmem [shape: f32[1,128], index: 4, kind: input, shape index: {}]
  %s5 = inlined_call_operand.vmem [shape: f32[1,128], index: 5, kind: input, shape index: {}]
  %s6 = inlined_call_operand.vmem [shape: f32[1792,128], index: 6, kind: output, shape index: {}]
  %s7 = sld [smem:[#allocation0]]
  $region57: #{gcn_forward.1} parent=0
    _
  %s9 = ssub.s32 1, %s7
  %s10 = scalar_select 0, %s9, %s7
  loop: start=0, step=1, limit=9
  $region2: #{gcn_forward.1} parent=0 // loop_pre_header
    _
  $region3: #{gcn_forward.1} parent=0 // loop_header
    %s12 = sphi 0, %s16
    %p13 = scmp.ge.s32.totalorder %s12, 9
    %s22 = sphi 0, %s24
    %s25 = sphi 0, %s22
    %s26 = sphi 0, %s25
    %s42 = sphi 0, %s26
    %s46 = sphi 0, %s46
    %s48 = sphi 0, %s46
    %s49 = sphi 0, %s48
    %s63 = sphi 0, %s49
    %s67 = sphi 0, %s67
    %s69 = sphi 0, %s67
    %s70 = sphi 0, %s69
    %s84 = sphi 0, %s70
    %s90 = sphi 0, %s92
    %s93 = sphi 0, %s90
    %s94 = sphi 0, %s93
    %s110 = sphi 0, %s94
    %s114 = sphi 0, %s114
    %s116 = sphi 0, %s114
    %s117 = sphi 0, %s116
    %s131 = sphi 0, %s117
    %s135 = sphi 0, %s135
    %s137 = sphi 0, %s135
    %s138 = sphi 0, %s137
    %s152 = sphi 0, %s138
    %s158 = sphi 0, %s160
    %s161 = sphi 0, %s158
    %s162 = sphi 0, %s161
    %s178 = sphi 0, %s162
  $region4: #{gcn_forward.1} parent=0 // loop_header_branch
    %15 = sbr.rel (%p13) target = $region8
  $region5: #{gcn_forward.1} parent=0 // loop_body
    %s17 = ssub.s32 %s12, 1
    %s18 = ssub.s32 %s12, 2
    %s19 = sadd.s32 %s12, 1
    %s20 = ssub.s32 %s12, %s19
    %p21 = scmp.eq.s32.totalorder %s20, 0
    %s23 = sadd.s32 %s22, 1
    %s24 = scalar_select %p21, %s22, %s23
    %p27 = pneg %p21
    %p28 = scmp.eq.s32.totalorder %s12, 6
    %p29 = por %p27, %p28
    %p30 = scmp.ne.s32.totalorder %s22, %s25
    %p31 = scmp.eq.s32.totalorder %s12, 0
    %p32 = por %p30, %p31
    %p33 = scmp.ne.s32.totalorder %s22, %s25
    %p34 = scmp.eq.s32.totalorder %s17, 6
    %p35 = por %p33, %p34
    %p36 = scmp.ne.s32.totalorder %s25, %s26
    %p37 = scmp.eq.s32.totalorder %s17, 0
    %p38 = por %p36, %p37
    %p39 = scmp.ne.s32.totalorder %s25, %s26
    %p40 = scmp.eq.s32.totalorder %s18, 6
    %p41 = por %p39, %p40
    %p43 = scmp.ne.s32.totalorder %s26, %s42
    %p44 = scmp.eq.s32.totalorder %s18, 0
    %p45 = por %p43, %p44
    %s47 = sadd.s32 %s46, 1
    %p50 = scmp.eq.s32.totalorder %s12, 6
    %p51 = scmp.ne.s32.totalorder %s46, %s48
    %p52 = scmp.eq.s32.totalorder %s12, 0
    %p53 = por %p51, %p52
    %p54 = scmp.ne.s32.totalorder %s46, %s48
    %p55 = scmp.eq.s32.totalorder %s17, 6
    %p56 = por %p54, %p55
    %p57 = scmp.ne.s32.totalorder %s48, %s49
    %p58 = scmp.eq.s32.totalorder %s17, 0
    %p59 = por %p57, %p58
    %p60 = scmp.ne.s32.totalorder %s48, %s49
    %p61 = scmp.eq.s32.totalorder %s18, 6
    %p62 = por %p60, %p61
    %p64 = scmp.ne.s32.totalorder %s49, %s63
    %p65 = scmp.eq.s32.totalorder %s18, 0
    %p66 = por %p64, %p65
    %s68 = sadd.s32 %s67, 1
    %p71 = scmp.eq.s32.totalorder %s12, 6
    %p72 = scmp.ne.s32.totalorder %s67, %s69
    %p73 = scmp.eq.s32.totalorder %s12, 0
    %p74 = por %p72, %p73
    %p75 = scmp.ne.s32.totalorder %s67, %s69
    %p76 = scmp.eq.s32.totalorder %s17, 6
    %p77 = por %p75, %p76
    %p78 = scmp.ne.s32.totalorder %s69, %s70
    %p79 = scmp.eq.s32.totalorder %s17, 0
    %p80 = por %p78, %p79
    %p81 = scmp.ne.s32.totalorder %s69, %s70
    %p82 = scmp.eq.s32.totalorder %s18, 6
    %p83 = por %p81, %p82
    %p85 = scmp.ne.s32.totalorder %s70, %s84
    %p86 = scmp.eq.s32.totalorder %s18, 0
    %p87 = por %p85, %p86
    %s88 = ssub.s32 %s12, %s19
    %p89 = scmp.eq.s32.totalorder %s88, 0
    %s91 = sadd.s32 %s90, 1
    %s92 = scalar_select %p89, %s90, %s91
    %p95 = pneg %p89
    %p96 = scmp.eq.s32.totalorder %s12, 6
    %p97 = por %p95, %p96
    %p98 = scmp.ne.s32.totalorder %s90, %s93
    %p99 = scmp.eq.s32.totalorder %s12, 0
    %p100 = por %p98, %p99
    %p101 = scmp.ne.s32.totalorder %s90, %s93
    %p102 = scmp.eq.s32.totalorder %s17, 6
    %p103 = por %p101, %p102
    %p104 = scmp.ne.s32.totalorder %s93, %s94
    %p105 = scmp.eq.s32.totalorder %s17, 0
    %p106 = por %p104, %p105
    %p107 = scmp.ne.s32.totalorder %s93, %s94
    %p108 = scmp.eq.s32.totalorder %s18, 6
    %p109 = por %p107, %p108
    %p111 = scmp.ne.s32.totalorder %s94, %s110
    %p112 = scmp.eq.s32.totalorder %s18, 0
    %p113 = por %p111, %p112
    %s115 = sadd.s32 %s114, 1
    %p118 = scmp.eq.s32.totalorder %s12, 6
    %p119 = scmp.ne.s32.totalorder %s114, %s116
    %p120 = scmp.eq.s32.totalorder %s12, 0
    %p121 = por %p119, %p120
    %p122 = scmp.ne.s32.totalorder %s114, %s116
    %p123 = scmp.eq.s32.totalorder %s17, 6
    %p124 = por %p122, %p123
    %p125 = scmp.ne.s32.totalorder %s116, %s117
    %p126 = scmp.eq.s32.totalorder %s17, 0
    %p127 = por %p125, %p126
    %p128 = scmp.ne.s32.totalorder %s116, %s117
    %p129 = scmp.eq.s32.totalorder %s18, 6
    %p130 = por %p128, %p129
    %p132 = scmp.ne.s32.totalorder %s117, %s131
    %p133 = scmp.eq.s32.totalorder %s18, 0
    %p134 = por %p132, %p133
    %s136 = sadd.s32 %s135, 1
    %p139 = scmp.eq.s32.totalorder %s12, 6
    %p140 = scmp.ne.s32.totalorder %s135, %s137
    %p141 = scmp.eq.s32.totalorder %s12, 0
    %p142 = por %p140, %p141
    %p143 = scmp.ne.s32.totalorder %s135, %s137
    %p144 = scmp.eq.s32.totalorder %s17, 6
    %p145 = por %p143, %p144
    %p146 = scmp.ne.s32.totalorder %s137, %s138
    %p147 = scmp.eq.s32.totalorder %s17, 0
    %p148 = por %p146, %p147
    %p149 = scmp.ne.s32.totalorder %s137, %s138
    %p150 = scmp.eq.s32.totalorder %s18, 6
    %p151 = por %p149, %p150
    %p153 = scmp.ne.s32.totalorder %s138, %s152
    %p154 = scmp.eq.s32.totalorder %s18, 0
    %p155 = por %p153, %p154
    %s156 = ssub.s32 %s12, %s19
    %p157 = scmp.eq.s32.totalorder %s156, 0
    %s159 = sadd.s32 %s158, 1
    %s160 = scalar_select %p157, %s158, %s159
    %p163 = pneg %p157
    %p164 = scmp.eq.s32.totalorder %s12, 6
    %p165 = por %p163, %p164
    %p166 = scmp.ne.s32.totalorder %s158, %s161
    %p167 = scmp.eq.s32.totalorder %s12, 0
    %p168 = por %p166, %p167
    %p169 = scmp.ne.s32.totalorder %s158, %s161
    %p170 = scmp.eq.s32.totalorder %s17, 6
    %p171 = por %p169, %p170
    %p172 = scmp.ne.s32.totalorder %s161, %s162
    %p173 = scmp.eq.s32.totalorder %s17, 0
    %p174 = por %p172, %p173
    %p175 = scmp.ne.s32.totalorder %s161, %s162
    %p176 = scmp.eq.s32.totalorder %s18, 6
    %p177 = por %p175, %p176
    %p179 = scmp.ne.s32.totalorder %s162, %s178
    %p180 = scmp.eq.s32.totalorder %s18, 0
    %p181 = por %p179, %p180
    %p182 = scmp.le.s32.totalorder 1, %s12
    %p183 = scmp.lt.s32.totalorder %s12, 8
    %p184 = pnand %p182, %p183
    %p185 = pneg %p184
    // Predicated region
    $region9: #{gcn_forward.1} parent=5 // pred_check
      _
    $region10: #{gcn_forward.1} parent=5 // pred_check_branch
      %187 = sbr.rel (%p184) target = $region12
    $region11: #{gcn_forward.1} parent=5 // pred_region
      %s188 = ssub.s32 %s12, 1
      // Predicated region
      $region13: #{gcn_forward.1} parent=11 // pred_check
        %p189 = pneg %p59
      $region14: #{gcn_forward.1} parent=11 // pred_check_branch
        %191 = sbr.rel (%p189) target = $region16
      $region15: #{gcn_forward.1} parent=11 // pred_region
        _
      $region16: #{gcn_forward.1} parent=11 // pred_fallthru
        _
      // Predicated region
      $region17: #{gcn_forward.1} parent=11 // pred_check
        %p192 = pneg %p80
      $region18: #{gcn_forward.1} parent=11 // pred_check_branch
        %194 = sbr.rel (%p192) target = $region20
      $region19: #{gcn_forward.1} parent=11 // pred_region
        _
      $region20: #{gcn_forward.1} parent=11 // pred_fallthru
        _
      // Predicated region
      $region21: #{gcn_forward.1} parent=11 // pred_check
        %p195 = pneg %p127
      $region22: #{gcn_forward.1} parent=11 // pred_check_branch
        %197 = sbr.rel (%p195) target = $region24
      $region23: #{gcn_forward.1} parent=11 // pred_region
        _
      $region24: #{gcn_forward.1} parent=11 // pred_fallthru
        _
      // Predicated region
      $region25: #{gcn_forward.1} parent=11 // pred_check
        %p198 = pneg %p148
      $region26: #{gcn_forward.1} parent=11 // pred_check_branch
        %200 = sbr.rel (%p198) target = $region28
      $region27: #{gcn_forward.1} parent=11 // pred_region
        _
      $region28: #{gcn_forward.1} parent=11 // pred_fallthru
        _
    $region12: #{gcn_forward.1} parent=5 // pred_fallthru
      _
    %p201 = scmp.lt.s32.totalorder %s12, 7
    // Predicated region
    $region29: #{gcn_forward.1} parent=5 // pred_check
      %p202 = pneg %p201
    $region30: #{gcn_forward.1} parent=5 // pred_check_branch
      %204 = sbr.rel (%p202) target = $region32
    $region31: #{gcn_forward.1} parent=5 // pred_region
      // Predicated region
      $region33: #{gcn_forward.1} parent=31 // pred_check
        %p205 = pneg %p32
      $region34: #{gcn_forward.1} parent=31 // pred_check_branch
        %207 = sbr.rel (%p205) target = $region36
      $region35: #{gcn_forward.1} parent=31 // pred_region
        %s208 = smul.u32 32, %s12
        %p209 = scmp.lt.s32.totalorder %s208, 223
        %s210 = scalar_select %p209, %s208, 223
        %s211 = smul.addr %s210, 4
        %s212 = smul.addr %s211, 8
        %s213 = scalar_lea.vmem %s0, %s212
        %s214 = smul.u32 32, %s12
      $region36: #{gcn_forward.1} parent=31 // pred_fallthru
        _
      // Predicated region
      $region37: #{gcn_forward.1} parent=31 // pred_check
        %p215 = pneg %p100
      $region38: #{gcn_forward.1} parent=31 // pred_check_branch
        %217 = sbr.rel (%p215) target = $region40
      $region39: #{gcn_forward.1} parent=31 // pred_region
        %s218 = smul.u32 32, %s12
        %p219 = scmp.lt.s32.totalorder %s218, 223
        %s220 = scalar_select %p219, %s218, 223
        %s221 = smul.addr %s220, 8
        %s222 = scalar_lea.vmem %s3, %s221
        %s223 = smul.u32 32, %s12
      $region40: #{gcn_forward.1} parent=31 // pred_fallthru
        _
    $region32: #{gcn_forward.1} parent=5 // pred_fallthru
      _
    %p224 = scmp.le.s32.totalorder 1, %s12
    %p225 = scmp.lt.s32.totalorder %s12, 8
    %p226 = pnand %p224, %p225
    %p227 = pneg %p226
    // Predicated region
    $region41: #{gcn_forward.1} parent=5 // pred_check
      _
    $region42: #{gcn_forward.1} parent=5 // pred_check_branch
      %229 = sbr.rel (%p226) target = $region44
    $region43: #{gcn_forward.1} parent=5 // pred_region
      %s230 = ssub.s32 %s12, 1
      %s231 = smul.u32 32, %s17
      %p232 = scmp.lt.s32.totalorder %s231, 223
      %s233 = scalar_select %p232, %s231, 223
      %s234 = smul.addr %s233, 4
      %s235 = smul.addr %s234, 8
      %s236 = scalar_lea.vmem %s0, %s235
      %p237 = pneg %p38
      %p238 = pneg %p35
      %p239 = pneg %p59
      %p240 = pneg %p56
      %p241 = pneg %p80
      %p242 = pneg %p77
      %s243 = smul.u32 32, %s17
      %p244 = scmp.lt.s32.totalorder %s243, 223
      %s245 = scalar_select %p244, %s243, 223
      %s246 = smul.addr %s245, 8
      %s247 = scalar_lea.vmem %s3, %s246
      %p248 = pneg %p106
      %p249 = pneg %p103
      %p250 = pneg %p127
      %p251 = pneg %p124
      %p252 = pneg %p148
      %p253 = pneg %p145
      %p254 = pneg %p174
      %p255 = pneg %p171
      %s256 = smul.u32 32, %s17
      %p257 = scmp.lt.s32.totalorder %s256, 223
      %s258 = scalar_select %p257, %s256, 223
      %s259 = smul.addr %s258, 8
      %s260 = scalar_lea.vmem %s6, %s259
      %s261 = smul.u32 32, %s17
      %p262 = scmp.lt.s32.totalorder %s261, 223
      %s263 = scalar_select %p262, %s261, 223
      %s264 = smul.addr %s263, 4
      %s265 = smul.addr %s264, 8
      %s266 = scalar_lea.vmem %s0, %s265
      %s267 = smul.u32 32, %s17
      %s268 = smul.u32 32, %s17
      %p269 = scmp.lt.s32.totalorder %s268, 223
      %s270 = scalar_select %p269, %s268, 223
      %s271 = smul.addr %s270, 8
      %s272 = scalar_lea.vmem %s3, %s271
      %s273 = smul.u32 32, %s17
      %s274 = smul.u32 32, %s17
      %p275 = scmp.lt.s32.totalorder %s274, 223
      %s276 = scalar_select %p275, %s274, 223
      %s277 = smul.addr %s276, 8
      %s278 = scalar_lea.vmem %s6, %s277
      %s279 = smul.u32 32, %s17
      %s280 = smul.u32 %s17, 256
      %s281 = ssub.s32 %s280, 128
      %p282 = scmp.gt.s32.totalorder %s281, 0
      %s283 = scalar_select %p282, %s281, 0
      %p284 = scmp.lt.s32.totalorder %s283, 1280
      %s285 = scalar_select %p284, %s283, 1280
      %s286 = scalar_lea.vmem %s1, %s285
      %v287 = vld [vmem:[%s286] sm:$0xff]
      %v288 = vld [vmem:[%s286 + $0x8] sm:$0xff]
      %v289 = vld [vmem:[%s286 + $0x10] sm:$0xff]
      %v290 = vld [vmem:[%s286 + $0x18] sm:$0xff]
      %v291 = vld [vmem:[%s286 + $0x20] sm:$0xff]
      %v292 = vld [vmem:[%s286 + $0x28] sm:$0xff]
      %v293 = vld [vmem:[%s286 + $0x30] sm:$0xff]
      %v294 = vld [vmem:[%s286 + $0x38] sm:$0xff]
      %v295 = vld [vmem:[%s286 + $0x40] sm:$0xff]
      %v296 = vld [vmem:[%s286 + $0x48] sm:$0xff]
      %v297 = vld [vmem:[%s286 + $0x50] sm:$0xff]
      %v298 = vld [vmem:[%s286 + $0x58] sm:$0xff]
      %v299 = vld [vmem:[%s286 + $0x60] sm:$0xff]
      %v300 = vld [vmem:[%s286 + $0x68] sm:$0xff]
      %v301 = vld [vmem:[%s286 + $0x70] sm:$0xff]
      %v302 = vld [vmem:[%s286 + $0x78] sm:$0xff]
      %v303 = vld [vmem:[%s286 + $0x80] sm:$0xff]
      %v304 = vld [vmem:[%s286 + $0x88] sm:$0xff]
      %v305 = vld [vmem:[%s286 + $0x90] sm:$0xff]
      %v306 = vld [vmem:[%s286 + $0x98] sm:$0xff]
      %v307 = vld [vmem:[%s286 + $0xa0] sm:$0xff]
      %v308 = vld [vmem:[%s286 + $0xa8] sm:$0xff]
      %v309 = vld [vmem:[%s286 + $0xb0] sm:$0xff]
      %v310 = vld [vmem:[%s286 + $0xb8] sm:$0xff]
      %v311 = vld [vmem:[%s286 + $0xc0] sm:$0xff]
      %v312 = vld [vmem:[%s286 + $0xc8] sm:$0xff]
      %v313 = vld [vmem:[%s286 + $0xd0] sm:$0xff]
      %v314 = vld [vmem:[%s286 + $0xd8] sm:$0xff]
      %v315 = vld [vmem:[%s286 + $0xe0] sm:$0xff]
      %v316 = vld [vmem:[%s286 + $0xe8] sm:$0xff]
      %v317 = vld [vmem:[%s286 + $0xf0] sm:$0xff]
      %v318 = vld [vmem:[%s286 + $0xf8] sm:$0xff]
      %v319 = vld [vmem:[%s286 + $0x100] sm:$0xff]
      %v320 = vld [vmem:[%s286 + $0x108] sm:$0xff]
      %v321 = vld [vmem:[%s286 + $0x110] sm:$0xff]
      %v322 = vld [vmem:[%s286 + $0x118] sm:$0xff]
      %v323 = vld [vmem:[%s286 + $0x120] sm:$0xff]
      %v324 = vld [vmem:[%s286 + $0x128] sm:$0xff]
      %v325 = vld [vmem:[%s286 + $0x130] sm:$0xff]
      %v326 = vld [vmem:[%s286 + $0x138] sm:$0xff]
      %v327 = vld [vmem:[%s286 + $0x140] sm:$0xff]
      %v328 = vld [vmem:[%s286 + $0x148] sm:$0xff]
      %v329 = vld [vmem:[%s286 + $0x150] sm:$0xff]
      %v330 = vld [vmem:[%s286 + $0x158] sm:$0xff]
      %v331 = vld [vmem:[%s286 + $0x160] sm:$0xff]
      %v332 = vld [vmem:[%s286 + $0x168] sm:$0xff]
      %v333 = vld [vmem:[%s286 + $0x170] sm:$0xff]
      %v334 = vld [vmem:[%s286 + $0x178] sm:$0xff]
      %v335 = vld [vmem:[%s286 + $0x180] sm:$0xff]
      %v336 = vld [vmem:[%s286 + $0x188] sm:$0xff]
      %v337 = vld [vmem:[%s286 + $0x190] sm:$0xff]
      %v338 = vld [vmem:[%s286 + $0x198] sm:$0xff]
      %v339 = vld [vmem:[%s286 + $0x1a0] sm:$0xff]
      %v340 = vld [vmem:[%s286 + $0x1a8] sm:$0xff]
      %v341 = vld [vmem:[%s286 + $0x1b0] sm:$0xff]
      %v342 = vld [vmem:[%s286 + $0x1b8] sm:$0xff]
      %v343 = vld [vmem:[%s286 + $0x1c0] sm:$0xff]
      %v344 = vld [vmem:[%s286 + $0x1c8] sm:$0xff]
      %v345 = vld [vmem:[%s286 + $0x1d0] sm:$0xff]
      %v346 = vld [vmem:[%s286 + $0x1d8] sm:$0xff]
      %v347 = vld [vmem:[%s286 + $0x1e0] sm:$0xff]
      %v348 = vld [vmem:[%s286 + $0x1e8] sm:$0xff]
      %v349 = vld [vmem:[%s286 + $0x1f0] sm:$0xff]
      %v350 = vld [vmem:[%s286 + $0x1f8] sm:$0xff]
      %v351 = vld [vmem:[%s2] sm:$0xff]
      %v352 = vld [vmem:[%s2 + $0x8] sm:$0xff]
      %v353 = vld [vmem:[%s2 + $0x10] sm:$0xff]
      %v354 = vld [vmem:[%s2 + $0x18] sm:$0xff]
      %v355 = vld [vmem:[%s2 + $0x20] sm:$0xff]
      %v356 = vld [vmem:[%s2 + $0x28] sm:$0xff]
      %v357 = vld [vmem:[%s2 + $0x30] sm:$0xff]
      %v358 = vld [vmem:[%s2 + $0x38] sm:$0xff]
      %v359 = vld [vmem:[%s2 + $0x40] sm:$0xff]
      %v360 = vld [vmem:[%s2 + $0x48] sm:$0xff]
      %v361 = vld [vmem:[%s2 + $0x50] sm:$0xff]
      %v362 = vld [vmem:[%s2 + $0x58] sm:$0xff]
      %v363 = vld [vmem:[%s2 + $0x60] sm:$0xff]
      %v364 = vld [vmem:[%s2 + $0x68] sm:$0xff]
      %v365 = vld [vmem:[%s2 + $0x70] sm:$0xff]
      %v366 = vld [vmem:[%s2 + $0x78] sm:$0xff]
      %367 = vmatprep.subr.mxu0 0.0
      %368 = vmatpush1.msra.mxu0 %v351
      %369 = vmatprep.subr.mxu0 0.0
      %370 = vmatpush1.msra.mxu0 %v352
      %371 = vmatprep.subr.mxu0 0.0
      %372 = vmatpush1.msra.mxu0 %v353
      %373 = vmatprep.subr.mxu0 0.0
      %374 = vmatpush1.msra.mxu0 %v354
      %375 = vmatprep.subr.mxu0 0.0
      %376 = vmatpush1.msra.mxu0 %v355
      %377 = vmatprep.subr.mxu0 0.0
      %378 = vmatpush1.msra.mxu0 %v356
      %379 = vmatprep.subr.mxu0 0.0
      %380 = vmatpush1.msra.mxu0 %v357
      %381 = vmatprep.subr.mxu0 0.0
      %382 = vmatpush1.msra.mxu0 %v358
      %383 = vmatprep.subr.mxu0 0.0
      %384 = vmatpush1.msra.mxu0 %v359
      %385 = vmatprep.subr.mxu0 0.0
      %386 = vmatpush1.msra.mxu0 %v360
      %387 = vmatprep.subr.mxu0 0.0
      %388 = vmatpush1.msra.mxu0 %v361
      %389 = vmatprep.subr.mxu0 0.0
      %390 = vmatpush1.msra.mxu0 %v362
      %391 = vmatprep.subr.mxu0 0.0
      %392 = vmatpush1.msra.mxu0 %v363
      %393 = vmatprep.subr.mxu0 0.0
      %394 = vmatpush1.msra.mxu0 %v364
      %395 = vmatprep.subr.mxu0 0.0
      %396 = vmatpush1.msra.mxu0 %v365
      %397 = vmatprep.subr.mxu0 0.0
      %398 = vmatpush1.msra.mxu0 %v366
      %399 = vmatprep.subr.mxu0 0.0
      %400 = vmatpush1.msra.mxu0 0.0
      %401 = vmatprep.subr.mxu0 0.0
      %402 = vmatpush1.msra.mxu0 0.0
      %403 = vmatprep.subr.mxu0 0.0
      %404 = vmatpush1.msra.mxu0 0.0
      %405 = vmatprep.subr.mxu0 0.0
      %406 = vmatpush1.msra.mxu0 0.0
      %407 = vmatprep.subr.mxu0 0.0
      %408 = vmatpush1.msra.mxu0 0.0
      %409 = vmatprep.subr.mxu0 0.0
      %410 = vmatpush1.msra.mxu0 0.0
      %411 = vmatprep.subr.mxu0 0.0
      %412 = vmatpush1.msra.mxu0 0.0
      %413 = vmatprep.subr.mxu0 0.0
      %414 = vmatpush1.msra.mxu0 0.0
      %415 = vmatprep.subr.mxu0 0.0
      %416 = vmatpush1.msra.mxu0 0.0
      %417 = vmatprep.subr.mxu0 0.0
      %418 = vmatpush1.msra.mxu0 0.0
      %419 = vmatprep.subr.mxu0 0.0
      %420 = vmatpush1.msra.mxu0 0.0
      %421 = vmatprep.subr.mxu0 0.0
      %422 = vmatpush1.msra.mxu0 0.0
      %423 = vmatprep.subr.mxu0 0.0
      %424 = vmatpush1.msra.mxu0 0.0
      %425 = vmatprep.subr.mxu0 0.0
      %426 = vmatpush1.msra.mxu0 0.0
      %427 = vmatprep.subr.mxu0 0.0
      %428 = vmatpush1.msra.mxu0 0.0
      %429 = vmatprep.subr.mxu0 0.0
      %430 = vmatpush1.msra.mxu0 0.0
      %431 = vmatprep.mubr.f32.mxu0 0.0
      %432 = vmatmul.mubr.f32.gmra.mrb[0].mxu0 %v287
      %v433 = vpop.f32.mrb[0].mxu0
      %v434 = vadd.f32 0.0, %v433
      %v435 = vpop.f32.mrb[0].mxu0
      %436 = vmatprep.mubr.f32.mxu0 0.0
      %437 = vmatmul.mubr.f32.gmra.mrb[0].mxu0 %v288
      %v438 = vpop.f32.mrb[0].mxu0
      %v439 = vadd.f32 0.0, %v438
      %v440 = vpop.f32.mrb[0].mxu0
      %441 = vmatprep.mubr.f32.mxu0 0.0
      %442 = vmatmul.mubr.f32.gmra.mrb[0].mxu0 %v289
      %v443 = vpop.f32.mrb[0].mxu0
      %v444 = vadd.f32 0.0, %v443
      %v445 = vpop.f32.mrb[0].mxu0
      %446 = vmatprep.mubr.f32.mxu0 0.0
      %447 = vmatmul.mubr.f32.gmra.mrb[0].mxu0 %v290
      %v448 = vpop.f32.mrb[0].mxu0
      %v449 = vadd.f32 0.0, %v448
      %v450 = vpop.f32.mrb[0].mxu0
      %451 = vmatprep.mubr.f32.mxu0 0.0
      %452 = vmatmul.mubr.f32.gmra.mrb[0].mxu0 %v291
      %v453 = vpop.f32.mrb[0].mxu0
      %v454 = vadd.f32 0.0, %v453
      %v455 = vpop.f32.mrb[0].mxu0
      %456 = vmatprep.mubr.f32.mxu0 0.0
      %457 = vmatmul.mubr.f32.gmra.mrb[0].mxu0 %v292
      %v458 = vpop.f32.mrb[0].mxu0
      %v459 = vadd.f32 0.0, %v458
      %v460 = vpop.f32.mrb[0].mxu0
      %461 = vmatprep.mubr.f32.mxu0 0.0
      %462 = vmatmul.mubr.f32.gmra.mrb[0].mxu0 %v293
      %v463 = vpop.f32.mrb[0].mxu0
      %v464 = vadd.f32 0.0, %v463
      %v465 = vpop.f32.mrb[0].mxu0
      %466 = vmatprep.mubr.f32.mxu0 0.0
      %467 = vmatmul.mubr.f32.gmra.mrb[0].mxu0 %v294
      %v468 = vpop.f32.mrb[0].mxu0
      %v469 = vadd.f32 0.0, %v468
      %v470 = vpop.f32.mrb[0].mxu0
      %471 = vmatprep.mubr.f32.mxu0 0.0
      %472 = vmatmul.mubr.f32.gmra.mrb[0].mxu0 %v295
      %v473 = vpop.f32.mrb[0].mxu0
      %v474 = vadd.f32 0.0, %v473
      %v475 = vpop.f32.mrb[0].mxu0
      %476 = vmatprep.mubr.f32.mxu0 0.0
      %477 = vmatmul.mubr.f32.gmra.mrb[0].mxu0 %v296
      %v478 = vpop.f32.mrb[0].mxu0
      %v479 = vadd.f32 0.0, %v478
      %v480 = vpop.f32.mrb[0].mxu0
      %481 = vmatprep.mubr.f32.mxu0 0.0
      %482 = vmatmul.mubr.f32.gmra.mrb[0].mxu0 %v297
      %v483 = vpop.f32.mrb[0].mxu0
      %v484 = vadd.f32 0.0, %v483
      %v485 = vpop.f32.mrb[0].mxu0
      %486 = vmatprep.mubr.f32.mxu0 0.0
      %487 = vmatmul.mubr.f32.gmra.mrb[0].mxu0 %v298
      %v488 = vpop.f32.mrb[0].mxu0
      %v489 = vadd.f32 0.0, %v488
      %v490 = vpop.f32.mrb[0].mxu0
      %491 = vmatprep.mubr.f32.mxu0 0.0
      %492 = vmatmul.mubr.f32.gmra.mrb[0].mxu0 %v299
      %v493 = vpop.f32.mrb[0].mxu0
      %v494 = vadd.f32 0.0, %v493
      %v495 = vpop.f32.mrb[0].mxu0
      %496 = vmatprep.mubr.f32.mxu0 0.0
      %497 = vmatmul.mubr.f32.gmra.mrb[0].mxu0 %v300
      %v498 = vpop.f32.mrb[0].mxu0
      %v499 = vadd.f32 0.0, %v498
      %v500 = vpop.f32.mrb[0].mxu0
      %501 = vmatprep.mubr.f32.mxu0 0.0
      %502 = vmatmul.mubr.f32.gmra.mrb[0].mxu0 %v301
      %v503 = vpop.f32.mrb[0].mxu0
      %v504 = vadd.f32 0.0, %v503
      %v505 = vpop.f32.mrb[0].mxu0
      %506 = vmatprep.mubr.f32.mxu0 0.0
      %507 = vmatmul.mubr.f32.gmra.mrb[0].mxu0 %v302
      %v508 = vpop.f32.mrb[0].mxu0
      %v509 = vadd.f32 0.0, %v508
      %v510 = vpop.f32.mrb[0].mxu0
      %511 = vmatprep.mubr.f32.mxu0 0.0
      %512 = vmatmul.mubr.f32.gmra.mrb[0].mxu0 %v303
      %v513 = vpop.f32.mrb[0].mxu0
      %v514 = vadd.f32 0.0, %v513
      %v515 = vpop.f32.mrb[0].mxu0
      %516 = vmatprep.mubr.f32.mxu0 0.0
      %517 = vmatmul.mubr.f32.gmra.mrb[0].mxu0 %v304
      %v518 = vpop.f32.mrb[0].mxu0
      %v519 = vadd.f32 0.0, %v518
      %v520 = vpop.f32.mrb[0].mxu0
      %521 = vmatprep.mubr.f32.mxu0 0.0
      %522 = vmatmul.mubr.f32.gmra.mrb[0].mxu0 %v305
      %v523 = vpop.f32.mrb[0].mxu0
      %v524 = vadd.f32 0.0, %v523
      %v525 = vpop.f32.mrb[0].mxu0
      %526 = vmatprep.mubr.f32.mxu0 0.0
      %527 = vmatmul.mubr.f32.gmra.mrb[0].mxu0 %v306
      %v528 = vpop.f32.mrb[0].mxu0
      %v529 = vadd.f32 0.0, %v528
      %v530 = vpop.f32.mrb[0].mxu0
      %531 = vmatprep.mubr.f32.mxu0 0.0
      %532 = vmatmul.mubr.f32.gmra.mrb[0].mxu0 %v307
      %v533 = vpop.f32.mrb[0].mxu0
      %v534 = vadd.f32 0.0, %v533
      %v535 = vpop.f32.mrb[0].mxu0
      %536 = vmatprep.mubr.f32.mxu0 0.0
      %537 = vmatmul.mubr.f32.gmra.mrb[0].mxu0 %v308
      %v538 = vpop.f32.mrb[0].mxu0
      %v539 = vadd.f32 0.0, %v538
      %v540 = vpop.f32.mrb[0].mxu0
      %541 = vmatprep.mubr.f32.mxu0 0.0
      %542 = vmatmul.mubr.f32.gmra.mrb[0].mxu0 %v309
      %v543 = vpop.f32.mrb[0].mxu0
      %v544 = vadd.f32 0.0, %v543
      %v545 = vpop.f32.mrb[0].mxu0
      %546 = vmatprep.mubr.f32.mxu0 0.0
      %547 = vmatmul.mubr.f32.gmra.mrb[0].mxu0 %v310
      %v548 = vpop.f32.mrb[0].mxu0
      %v549 = vadd.f32 0.0, %v548
      %v550 = vpop.f32.mrb[0].mxu0
      %551 = vmatprep.mubr.f32.mxu0 0.0
      %552 = vmatmul.mubr.f32.gmra.mrb[0].mxu0 %v311
      %v553 = vpop.f32.mrb[0].mxu0
      %v554 = vadd.f32 0.0, %v553
      %v555 = vpop.f32.mrb[0].mxu0
      %556 = vmatprep.mubr.f32.mxu0 0.0
      %557 = vmatmul.mubr.f32.gmra.mrb[0].mxu0 %v312
      %v558 = vpop.f32.mrb[0].mxu0
      %v559 = vadd.f32 0.0, %v558
      %v560 = vpop.f32.mrb[0].mxu0
      %561 = vmatprep.mubr.f32.mxu0 0.0
      %562 = vmatmul.mubr.f32.gmra.mrb[0].mxu0 %v313
      %v563 = vpop.f32.mrb[0].mxu0
      %v564 = vadd.f32 0.0, %v563
      %v565 = vpop.f32.mrb[0].mxu0
      %566 = vmatprep.mubr.f32.mxu0 0.0
      %567 = vmatmul.mubr.f32.gmra.mrb[0].mxu0 %v314
      %v568 = vpop.f32.mrb[0].mxu0
      %v569 = vadd.f32 0.0, %v568
      %v570 = vpop.f32.mrb[0].mxu0
      %571 = vmatprep.mubr.f32.mxu0 0.0
      %572 = vmatmul.mubr.f32.gmra.mrb[0].mxu0 %v315
      %v573 = vpop.f32.mrb[0].mxu0
      %v574 = vadd.f32 0.0, %v573
      %v575 = vpop.f32.mrb[0].mxu0
      %576 = vmatprep.mubr.f32.mxu0 0.0
      %577 = vmatmul.mubr.f32.gmra.mrb[0].mxu0 %v316
      %v578 = vpop.f32.mrb[0].mxu0
      %v579 = vadd.f32 0.0, %v578
      %v580 = vpop.f32.mrb[0].mxu0
      %581 = vmatprep.mubr.f32.mxu0 0.0
      %582 = vmatmul.mubr.f32.gmra.mrb[0].mxu0 %v317
      %v583 = vpop.f32.mrb[0].mxu0
      %v584 = vadd.f32 0.0, %v583
      %v585 = vpop.f32.mrb[0].mxu0
      %586 = vmatprep.mubr.f32.mxu0 0.0
      %587 = vmatmul.mubr.f32.gmra.mrb[0].mxu0 %v318
      %v588 = vpop.f32.mrb[0].mxu0
      %v589 = vadd.f32 0.0, %v588
      %v590 = vpop.f32.mrb[0].mxu0
      %591 = vmatprep.mubr.f32.mxu0 0.0
      %592 = vmatmul.mubr.f32.gmra.mrb[0].mxu0 %v319
      %v593 = vpop.f32.mrb[0].mxu0
      %v594 = vadd.f32 0.0, %v593
      %v595 = vpop.f32.mrb[0].mxu0
      %596 = vmatprep.mubr.f32.mxu0 0.0
      %597 = vmatmul.mubr.f32.gmra.mrb[0].mxu0 %v320
      %v598 = vpop.f32.mrb[0].mxu0
      %v599 = vadd.f32 0.0, %v598
      %v600 = vpop.f32.mrb[0].mxu0
      %601 = vmatprep.mubr.f32.mxu0 0.0
      %602 = vmatmul.mubr.f32.gmra.mrb[0].mxu0 %v321
      %v603 = vpop.f32.mrb[0].mxu0
      %v604 = vadd.f32 0.0, %v603
      %v605 = vpop.f32.mrb[0].mxu0
      %606 = vmatprep.mubr.f32.mxu0 0.0
      %607 = vmatmul.mubr.f32.gmra.mrb[0].mxu0 %v322
      %v608 = vpop.f32.mrb[0].mxu0
      %v609 = vadd.f32 0.0, %v608
      %v610 = vpop.f32.mrb[0].mxu0
      %611 = vmatprep.mubr.f32.mxu0 0.0
      %612 = vmatmul.mubr.f32.gmra.mrb[0].mxu0 %v323
      %v613 = vpop.f32.mrb[0].mxu0
      %v614 = vadd.f32 0.0, %v613
      %v615 = vpop.f32.mrb[0].mxu0
      %616 = vmatprep.mubr.f32.mxu0 0.0
      %617 = vmatmul.mubr.f32.gmra.mrb[0].mxu0 %v324
      %v618 = vpop.f32.mrb[0].mxu0
      %v619 = vadd.f32 0.0, %v618
      %v620 = vpop.f32.mrb[0].mxu0
      %621 = vmatprep.mubr.f32.mxu0 0.0
      %622 = vmatmul.mubr.f32.gmra.mrb[0].mxu0 %v325
      %v623 = vpop.f32.mrb[0].mxu0
      %v624 = vadd.f32 0.0, %v623
      %v625 = vpop.f32.mrb[0].mxu0
      %626 = vmatprep.mubr.f32.mxu0 0.0
      %627 = vmatmul.mubr.f32.gmra.mrb[0].mxu0 %v326
      %v628 = vpop.f32.mrb[0].mxu0
      %v629 = vadd.f32 0.0, %v628
      %v630 = vpop.f32.mrb[0].mxu0
      %631 = vmatprep.mubr.f32.mxu0 0.0
      %632 = vmatmul.mubr.f32.gmra.mrb[0].mxu0 %v327
      %v633 = vpop.f32.mrb[0].mxu0
      %v634 = vadd.f32 0.0, %v633
      %v635 = vpop.f32.mrb[0].mxu0
      %636 = vmatprep.mubr.f32.mxu0 0.0
      %637 = vmatmul.mubr.f32.gmra.mrb[0].mxu0 %v328
      %v638 = vpop.f32.mrb[0].mxu0
      %v639 = vadd.f32 0.0, %v638
      %v640 = vpop.f32.mrb[0].mxu0
      %641 = vmatprep.mubr.f32.mxu0 0.0
      %642 = vmatmul.mubr.f32.gmra.mrb[0].mxu0 %v329
      %v643 = vpop.f32.mrb[0].mxu0
      %v644 = vadd.f32 0.0, %v643
      %v645 = vpop.f32.mrb[0].mxu0
      %646 = vmatprep.mubr.f32.mxu0 0.0
      %647 = vmatmul.mubr.f32.gmra.mrb[0].mxu0 %v330
      %v648 = vpop.f32.mrb[0].mxu0
      %v649 = vadd.f32 0.0, %v648
      %v650 = vpop.f32.mrb[0].mxu0
      %651 = vmatprep.mubr.f32.mxu0 0.0
      %652 = vmatmul.mubr.f32.gmra.mrb[0].mxu0 %v331
      %v653 = vpop.f32.mrb[0].mxu0
      %v654 = vadd.f32 0.0, %v653
      %v655 = vpop.f32.mrb[0].mxu0
      %656 = vmatprep.mubr.f32.mxu0 0.0
      %657 = vmatmul.mubr.f32.gmra.mrb[0].mxu0 %v332
      %v658 = vpop.f32.mrb[0].mxu0
      %v659 = vadd.f32 0.0, %v658
      %v660 = vpop.f32.mrb[0].mxu0
      %661 = vmatprep.mubr.f32.mxu0 0.0
      %662 = vmatmul.mubr.f32.gmra.mrb[0].mxu0 %v333
      %v663 = vpop.f32.mrb[0].mxu0
      %v664 = vadd.f32 0.0, %v663
      %v665 = vpop.f32.mrb[0].mxu0
      %666 = vmatprep.mubr.f32.mxu0 0.0
      %667 = vmatmul.mubr.f32.gmra.mrb[0].mxu0 %v334
      %v668 = vpop.f32.mrb[0].mxu0
      %v669 = vadd.f32 0.0, %v668
      %v670 = vpop.f32.mrb[0].mxu0
      %671 = vmatprep.mubr.f32.mxu0 0.0
      %672 = vmatmul.mubr.f32.gmra.mrb[0].mxu0 %v335
      %v673 = vpop.f32.mrb[0].mxu0
      %v674 = vadd.f32 0.0, %v673
      %v675 = vpop.f32.mrb[0].mxu0
      %676 = vmatprep.mubr.f32.mxu0 0.0
      %677 = vmatmul.mubr.f32.gmra.mrb[0].mxu0 %v336
      %v678 = vpop.f32.mrb[0].mxu0
      %v679 = vadd.f32 0.0, %v678
      %v680 = vpop.f32.mrb[0].mxu0
      %681 = vmatprep.mubr.f32.mxu0 0.0
      %682 = vmatmul.mubr.f32.gmra.mrb[0].mxu0 %v337
      %v683 = vpop.f32.mrb[0].mxu0
      %v684 = vadd.f32 0.0, %v683
      %v685 = vpop.f32.mrb[0].mxu0
      %686 = vmatprep.mubr.f32.mxu0 0.0
      %687 = vmatmul.mubr.f32.gmra.mrb[0].mxu0 %v338
      %v688 = vpop.f32.mrb[0].mxu0
      %v689 = vadd.f32 0.0, %v688
      %v690 = vpop.f32.mrb[0].mxu0
      %691 = vmatprep.mubr.f32.mxu0 0.0
      %692 = vmatmul.mubr.f32.gmra.mrb[0].mxu0 %v339
      %v693 = vpop.f32.mrb[0].mxu0
      %v694 = vadd.f32 0.0, %v693
      %v695 = vpop.f32.mrb[0].mxu0
      %696 = vmatprep.mubr.f32.mxu0 0.0
      %697 = vmatmul.mubr.f32.gmra.mrb[0].mxu0 %v340
      %v698 = vpop.f32.mrb[0].mxu0
      %v699 = vadd.f32 0.0, %v698
      %v700 = vpop.f32.mrb[0].mxu0
      %701 = vmatprep.mubr.f32.mxu0 0.0
      %702 = vmatmul.mubr.f32.gmra.mrb[0].mxu0 %v341
      %v703 = vpop.f32.mrb[0].mxu0
      %v704 = vadd.f32 0.0, %v703
      %v705 = vpop.f32.mrb[0].mxu0
      %706 = vmatprep.mubr.f32.mxu0 0.0
      %707 = vmatmul.mubr.f32.gmra.mrb[0].mxu0 %v342
      %v708 = vpop.f32.mrb[0].mxu0
      %v709 = vadd.f32 0.0, %v708
      %v710 = vpop.f32.mrb[0].mxu0
      %711 = vmatprep.mubr.f32.mxu0 0.0
      %712 = vmatmul.mubr.f32.gmra.mrb[0].mxu0 %v343
      %v713 = vpop.f32.mrb[0].mxu0
      %v714 = vadd.f32 0.0, %v713
      %v715 = vpop.f32.mrb[0].mxu0
      %716 = vmatprep.mubr.f32.mxu0 0.0
      %717 = vmatmul.mubr.f32.gmra.mrb[0].mxu0 %v344
      %v718 = vpop.f32.mrb[0].mxu0
      %v719 = vadd.f32 0.0, %v718
      %v720 = vpop.f32.mrb[0].mxu0
      %721 = vmatprep.mubr.f32.mxu0 0.0
      %722 = vmatmul.mubr.f32.gmra.mrb[0].mxu0 %v345
      %v723 = vpop.f32.mrb[0].mxu0
      %v724 = vadd.f32 0.0, %v723
      %v725 = vpop.f32.mrb[0].mxu0
      %726 = vmatprep.mubr.f32.mxu0 0.0
      %727 = vmatmul.mubr.f32.gmra.mrb[0].mxu0 %v346
      %v728 = vpop.f32.mrb[0].mxu0
      %v729 = vadd.f32 0.0, %v728
      %v730 = vpop.f32.mrb[0].mxu0
      %731 = vmatprep.mubr.f32.mxu0 0.0
      %732 = vmatmul.mubr.f32.gmra.mrb[0].mxu0 %v347
      %v733 = vpop.f32.mrb[0].mxu0
      %v734 = vadd.f32 0.0, %v733
      %v735 = vpop.f32.mrb[0].mxu0
      %736 = vmatprep.mubr.f32.mxu0 0.0
      %737 = vmatmul.mubr.f32.gmra.mrb[0].mxu0 %v348
      %v738 = vpop.f32.mrb[0].mxu0
      %v739 = vadd.f32 0.0, %v738
      %v740 = vpop.f32.mrb[0].mxu0
      %741 = vmatprep.mubr.f32.mxu0 0.0
      %742 = vmatmul.mubr.f32.gmra.mrb[0].mxu0 %v349
      %v743 = vpop.f32.mrb[0].mxu0
      %v744 = vadd.f32 0.0, %v743
      %v745 = vpop.f32.mrb[0].mxu0
      %746 = vmatprep.mubr.f32.mxu0 0.0
      %747 = vmatmul.mubr.f32.gmra.mrb[0].mxu0 %v350
      %v748 = vpop.f32.mrb[0].mxu0
      %v749 = vadd.f32 0.0, %v748
      %v750 = vpop.f32.mrb[0].mxu0
      %751 = vdwg.mxu0
      %v752 = vld [vmem:[%s266] sm:$0xff]
      %v753 = vld [vmem:[%s266 + $0x8] sm:$0xff]
      %v754 = vld [vmem:[%s266 + $0x10] sm:$0xff]
      %v755 = vld [vmem:[%s266 + $0x18] sm:$0xff]
      %v756 = vld [vmem:[%s266 + $0x20] sm:$0xff]
      %v757 = vld [vmem:[%s266 + $0x28] sm:$0xff]
      %v758 = vld [vmem:[%s266 + $0x30] sm:$0xff]
      %v759 = vld [vmem:[%s266 + $0x38] sm:$0xff]
      %v760 = vld [vmem:[%s266 + $0x40] sm:$0xff]
      %v761 = vld [vmem:[%s266 + $0x48] sm:$0xff]
      %v762 = vld [vmem:[%s266 + $0x50] sm:$0xff]
      %v763 = vld [vmem:[%s266 + $0x58] sm:$0xff]
      %v764 = vld [vmem:[%s266 + $0x60] sm:$0xff]
      %v765 = vld [vmem:[%s266 + $0x68] sm:$0xff]
      %v766 = vld [vmem:[%s266 + $0x70] sm:$0xff]
      %v767 = vld [vmem:[%s266 + $0x78] sm:$0xff]
      %v768 = vld [vmem:[%s266 + $0x80] sm:$0xff]
      %v769 = vld [vmem:[%s266 + $0x88] sm:$0xff]
      %v770 = vld [vmem:[%s266 + $0x90] sm:$0xff]
      %v771 = vld [vmem:[%s266 + $0x98] sm:$0xff]
      %v772 = vld [vmem:[%s266 + $0xa0] sm:$0xff]
      %v773 = vld [vmem:[%s266 + $0xa8] sm:$0xff]
      %v774 = vld [vmem:[%s266 + $0xb0] sm:$0xff]
      %v775 = vld [vmem:[%s266 + $0xb8] sm:$0xff]
      %v776 = vld [vmem:[%s266 + $0xc0] sm:$0xff]
      %v777 = vld [vmem:[%s266 + $0xc8] sm:$0xff]
      %v778 = vld [vmem:[%s266 + $0xd0] sm:$0xff]
      %v779 = vld [vmem:[%s266 + $0xd8] sm:$0xff]
      %v780 = vld [vmem:[%s266 + $0xe0] sm:$0xff]
      %v781 = vld [vmem:[%s266 + $0xe8] sm:$0xff]
      %v782 = vld [vmem:[%s266 + $0xf0] sm:$0xff]
      %v783 = vld [vmem:[%s266 + $0xf8] sm:$0xff]
      %v784 = vld [vmem:[%s266 + $0x100] sm:$0xff]
      %v785 = vld [vmem:[%s266 + $0x108] sm:$0xff]
      %v786 = vld [vmem:[%s266 + $0x110] sm:$0xff]
      %v787 = vld [vmem:[%s266 + $0x118] sm:$0xff]
      %v788 = vld [vmem:[%s266 + $0x120] sm:$0xff]
      %v789 = vld [vmem:[%s266 + $0x128] sm:$0xff]
      %v790 = vld [vmem:[%s266 + $0x130] sm:$0xff]
      %v791 = vld [vmem:[%s266 + $0x138] sm:$0xff]
      %v792 = vld [vmem:[%s266 + $0x140] sm:$0xff]
      %v793 = vld [vmem:[%s266 + $0x148] sm:$0xff]
      %v794 = vld [vmem:[%s266 + $0x150] sm:$0xff]
      %v795 = vld [vmem:[%s266 + $0x158] sm:$0xff]
      %v796 = vld [vmem:[%s266 + $0x160] sm:$0xff]
      %v797 = vld [vmem:[%s266 + $0x168] sm:$0xff]
      %v798 = vld [vmem:[%s266 + $0x170] sm:$0xff]
      %v799 = vld [vmem:[%s266 + $0x178] sm:$0xff]
      %v800 = vld [vmem:[%s266 + $0x180] sm:$0xff]
      %v801 = vld [vmem:[%s266 + $0x188] sm:$0xff]
      %v802 = vld [vmem:[%s266 + $0x190] sm:$0xff]
      %v803 = vld [vmem:[%s266 + $0x198] sm:$0xff]
      %v804 = vld [vmem:[%s266 + $0x1a0] sm:$0xff]
      %v805 = vld [vmem:[%s266 + $0x1a8] sm:$0xff]
      %v806 = vld [vmem:[%s266 + $0x1b0] sm:$0xff]
      %v807 = vld [vmem:[%s266 + $0x1b8] sm:$0xff]
      %v808 = vld [vmem:[%s266 + $0x1c0] sm:$0xff]
      %v809 = vld [vmem:[%s266 + $0x1c8] sm:$0xff]
      %v810 = vld [vmem:[%s266 + $0x1d0] sm:$0xff]
      %v811 = vld [vmem:[%s266 + $0x1d8] sm:$0xff]
      %v812 = vld [vmem:[%s266 + $0x1e0] sm:$0xff]
      %v813 = vld [vmem:[%s266 + $0x1e8] sm:$0xff]
      %v814 = vld [vmem:[%s266 + $0x1f0] sm:$0xff]
      %v815 = vld [vmem:[%s266 + $0x1f8] sm:$0xff]
      %v816 = vld [vmem:[%s266 + $0x200] sm:$0xff]
      %v817 = vld [vmem:[%s266 + $0x208] sm:$0xff]
      %v818 = vld [vmem:[%s266 + $0x210] sm:$0xff]
      %v819 = vld [vmem:[%s266 + $0x218] sm:$0xff]
      %v820 = vld [vmem:[%s266 + $0x220] sm:$0xff]
      %v821 = vld [vmem:[%s266 + $0x228] sm:$0xff]
      %v822 = vld [vmem:[%s266 + $0x230] sm:$0xff]
      %v823 = vld [vmem:[%s266 + $0x238] sm:$0xff]
      %v824 = vld [vmem:[%s266 + $0x240] sm:$0xff]
      %v825 = vld [vmem:[%s266 + $0x248] sm:$0xff]
      %v826 = vld [vmem:[%s266 + $0x250] sm:$0xff]
      %v827 = vld [vmem:[%s266 + $0x258] sm:$0xff]
      %v828 = vld [vmem:[%s266 + $0x260] sm:$0xff]
      %v829 = vld [vmem:[%s266 + $0x268] sm:$0xff]
      %v830 = vld [vmem:[%s266 + $0x270] sm:$0xff]
      %v831 = vld [vmem:[%s266 + $0x278] sm:$0xff]
      %v832 = vld [vmem:[%s266 + $0x280] sm:$0xff]
      %v833 = vld [vmem:[%s266 + $0x288] sm:$0xff]
      %v834 = vld [vmem:[%s266 + $0x290] sm:$0xff]
      %v835 = vld [vmem:[%s266 + $0x298] sm:$0xff]
      %v836 = vld [vmem:[%s266 + $0x2a0] sm:$0xff]
      %v837 = vld [vmem:[%s266 + $0x2a8] sm:$0xff]
      %v838 = vld [vmem:[%s266 + $0x2b0] sm:$0xff]
      %v839 = vld [vmem:[%s266 + $0x2b8] sm:$0xff]
      %v840 = vld [vmem:[%s266 + $0x2c0] sm:$0xff]
      %v841 = vld [vmem:[%s266 + $0x2c8] sm:$0xff]
      %v842 = vld [vmem:[%s266 + $0x2d0] sm:$0xff]
      %v843 = vld [vmem:[%s266 + $0x2d8] sm:$0xff]
      %v844 = vld [vmem:[%s266 + $0x2e0] sm:$0xff]
      %v845 = vld [vmem:[%s266 + $0x2e8] sm:$0xff]
      %v846 = vld [vmem:[%s266 + $0x2f0] sm:$0xff]
      %v847 = vld [vmem:[%s266 + $0x2f8] sm:$0xff]
      %v848 = vld [vmem:[%s266 + $0x300] sm:$0xff]
      %v849 = vld [vmem:[%s266 + $0x308] sm:$0xff]
      %v850 = vld [vmem:[%s266 + $0x310] sm:$0xff]
      %v851 = vld [vmem:[%s266 + $0x318] sm:$0xff]
      %v852 = vld [vmem:[%s266 + $0x320] sm:$0xff]
      %v853 = vld [vmem:[%s266 + $0x328] sm:$0xff]
      %v854 = vld [vmem:[%s266 + $0x330] sm:$0xff]
      %v855 = vld [vmem:[%s266 + $0x338] sm:$0xff]
      %v856 = vld [vmem:[%s266 + $0x340] sm:$0xff]
      %v857 = vld [vmem:[%s266 + $0x348] sm:$0xff]
      %v858 = vld [vmem:[%s266 + $0x350] sm:$0xff]
      %v859 = vld [vmem:[%s266 + $0x358] sm:$0xff]
      %v860 = vld [vmem:[%s266 + $0x360] sm:$0xff]
      %v861 = vld [vmem:[%s266 + $0x368] sm:$0xff]
      %v862 = vld [vmem:[%s266 + $0x370] sm:$0xff]
      %v863 = vld [vmem:[%s266 + $0x378] sm:$0xff]
      %v864 = vld [vmem:[%s266 + $0x380] sm:$0xff]
      %v865 = vld [vmem:[%s266 + $0x388] sm:$0xff]
      %v866 = vld [vmem:[%s266 + $0x390] sm:$0xff]
      %v867 = vld [vmem:[%s266 + $0x398] sm:$0xff]
      %v868 = vld [vmem:[%s266 + $0x3a0] sm:$0xff]
      %v869 = vld [vmem:[%s266 + $0x3a8] sm:$0xff]
      %v870 = vld [vmem:[%s266 + $0x3b0] sm:$0xff]
      %v871 = vld [vmem:[%s266 + $0x3b8] sm:$0xff]
      %v872 = vld [vmem:[%s266 + $0x3c0] sm:$0xff]
      %v873 = vld [vmem:[%s266 + $0x3c8] sm:$0xff]
      %v874 = vld [vmem:[%s266 + $0x3d0] sm:$0xff]
      %v875 = vld [vmem:[%s266 + $0x3d8] sm:$0xff]
      %v876 = vld [vmem:[%s266 + $0x3e0] sm:$0xff]
      %v877 = vld [vmem:[%s266 + $0x3e8] sm:$0xff]
      %v878 = vld [vmem:[%s266 + $0x3f0] sm:$0xff]
      %v879 = vld [vmem:[%s266 + $0x3f8] sm:$0xff]
      %v880 = vld [vmem:[%s272] sm:$0xff]
      %v881 = vld [vmem:[%s272 + $0x8] sm:$0xff]
      %v882 = vld [vmem:[%s272 + $0x10] sm:$0xff]
      %v883 = vld [vmem:[%s272 + $0x18] sm:$0xff]
      %v884 = vld [vmem:[%s272 + $0x20] sm:$0xff]
      %v885 = vld [vmem:[%s272 + $0x28] sm:$0xff]
      %v886 = vld [vmem:[%s272 + $0x30] sm:$0xff]
      %v887 = vld [vmem:[%s272 + $0x38] sm:$0xff]
      %v888 = vld [vmem:[%s272 + $0x40] sm:$0xff]
      %v889 = vld [vmem:[%s272 + $0x48] sm:$0xff]
      %v890 = vld [vmem:[%s272 + $0x50] sm:$0xff]
      %v891 = vld [vmem:[%s272 + $0x58] sm:$0xff]
      %v892 = vld [vmem:[%s272 + $0x60] sm:$0xff]
      %v893 = vld [vmem:[%s272 + $0x68] sm:$0xff]
      %v894 = vld [vmem:[%s272 + $0x70] sm:$0xff]
      %v895 = vld [vmem:[%s272 + $0x78] sm:$0xff]
      %v896 = vld [vmem:[%s272 + $0x80] sm:$0xff]
      %v897 = vld [vmem:[%s272 + $0x88] sm:$0xff]
      %v898 = vld [vmem:[%s272 + $0x90] sm:$0xff]
      %v899 = vld [vmem:[%s272 + $0x98] sm:$0xff]
      %v900 = vld [vmem:[%s272 + $0xa0] sm:$0xff]
      %v901 = vld [vmem:[%s272 + $0xa8] sm:$0xff]
      %v902 = vld [vmem:[%s272 + $0xb0] sm:$0xff]
      %v903 = vld [vmem:[%s272 + $0xb8] sm:$0xff]
      %v904 = vld [vmem:[%s272 + $0xc0] sm:$0xff]
      %v905 = vld [vmem:[%s272 + $0xc8] sm:$0xff]
      %v906 = vld [vmem:[%s272 + $0xd0] sm:$0xff]
      %v907 = vld [vmem:[%s272 + $0xd8] sm:$0xff]
      %v908 = vld [vmem:[%s272 + $0xe0] sm:$0xff]
      %v909 = vld [vmem:[%s272 + $0xe8] sm:$0xff]
      %v910 = vld [vmem:[%s272 + $0xf0] sm:$0xff]
      %v911 = vld [vmem:[%s272 + $0xf8] sm:$0xff]
      %v912 = vld [vmem:[%s4] sm:$0x1]
      %914 = vset.pattern.permute.xlu0 0
      %915 = vperm.xlu0 %914, %v880
      %v916 = vpop.permute.xlu0 %915
      %919 = vset.pattern.permute.xlu0 0
      %920 = vperm.xlu0 %919, %v881
      %v921 = vpop.permute.xlu0 %920
      %924 = vset.pattern.permute.xlu0 0
      %925 = vperm.xlu0 %924, %v882
      %v926 = vpop.permute.xlu0 %925
      %929 = vset.pattern.permute.xlu0 0
      %930 = vperm.xlu0 %929, %v883
      %v931 = vpop.permute.xlu0 %930
      %934 = vset.pattern.permute.xlu0 0
      %935 = vperm.xlu0 %934, %v884
      %v936 = vpop.permute.xlu0 %935
      %939 = vset.pattern.permute.xlu0 0
      %940 = vperm.xlu0 %939, %v885
      %v941 = vpop.permute.xlu0 %940
      %944 = vset.pattern.permute.xlu0 0
      %945 = vperm.xlu0 %944, %v886
      %v946 = vpop.permute.xlu0 %945
      %949 = vset.pattern.permute.xlu0 0
      %950 = vperm.xlu0 %949, %v887
      %v951 = vpop.permute.xlu0 %950
      %954 = vset.pattern.permute.xlu0 0
      %955 = vperm.xlu0 %954, %v888
      %v956 = vpop.permute.xlu0 %955
      %959 = vset.pattern.permute.xlu0 0
      %960 = vperm.xlu0 %959, %v889
      %v961 = vpop.permute.xlu0 %960
      %964 = vset.pattern.permute.xlu0 0
      %965 = vperm.xlu0 %964, %v890
      %v966 = vpop.permute.xlu0 %965
      %969 = vset.pattern.permute.xlu0 0
      %970 = vperm.xlu0 %969, %v891
      %v971 = vpop.permute.xlu0 %970
      %974 = vset.pattern.permute.xlu0 0
      %975 = vperm.xlu0 %974, %v892
      %v976 = vpop.permute.xlu0 %975
      %979 = vset.pattern.permute.xlu0 0
      %980 = vperm.xlu0 %979, %v893
      %v981 = vpop.permute.xlu0 %980
      %984 = vset.pattern.permute.xlu0 0
      %985 = vperm.xlu0 %984, %v894
      %v986 = vpop.permute.xlu0 %985
      %989 = vset.pattern.permute.xlu0 0
      %990 = vperm.xlu0 %989, %v895
      %v991 = vpop.permute.xlu0 %990
      %994 = vset.pattern.permute.xlu0 0
      %995 = vperm.xlu0 %994, %v896
      %v996 = vpop.permute.xlu0 %995
      %999 = vset.pattern.permute.xlu0 0
      %1000 = vperm.xlu0 %999, %v897
      %v1001 = vpop.permute.xlu0 %1000
      %1004 = vset.pattern.permute.xlu0 0
      %1005 = vperm.xlu0 %1004, %v898
      %v1006 = vpop.permute.xlu0 %1005
      %1009 = vset.pattern.permute.xlu0 0
      %1010 = vperm.xlu0 %1009, %v899
      %v1011 = vpop.permute.xlu0 %1010
      %1014 = vset.pattern.permute.xlu0 0
      %1015 = vperm.xlu0 %1014, %v900
      %v1016 = vpop.permute.xlu0 %1015
      %1019 = vset.pattern.permute.xlu0 0
      %1020 = vperm.xlu0 %1019, %v901
      %v1021 = vpop.permute.xlu0 %1020
      %1024 = vset.pattern.permute.xlu0 0
      %1025 = vperm.xlu0 %1024, %v902
      %v1026 = vpop.permute.xlu0 %1025
      %1029 = vset.pattern.permute.xlu0 0
      %1030 = vperm.xlu0 %1029, %v903
      %v1031 = vpop.permute.xlu0 %1030
      %1034 = vset.pattern.permute.xlu0 0
      %1035 = vperm.xlu0 %1034, %v904
      %v1036 = vpop.permute.xlu0 %1035
      %1039 = vset.pattern.permute.xlu0 0
      %1040 = vperm.xlu0 %1039, %v905
      %v1041 = vpop.permute.xlu0 %1040
      %1044 = vset.pattern.permute.xlu0 0
      %1045 = vperm.xlu0 %1044, %v906
      %v1046 = vpop.permute.xlu0 %1045
      %1049 = vset.pattern.permute.xlu0 0
      %1050 = vperm.xlu0 %1049, %v907
      %v1051 = vpop.permute.xlu0 %1050
      %1054 = vset.pattern.permute.xlu0 0
      %1055 = vperm.xlu0 %1054, %v908
      %v1056 = vpop.permute.xlu0 %1055
      %1059 = vset.pattern.permute.xlu0 0
      %1060 = vperm.xlu0 %1059, %v909
      %v1061 = vpop.permute.xlu0 %1060
      %1064 = vset.pattern.permute.xlu0 0
      %1065 = vperm.xlu0 %1064, %v910
      %v1066 = vpop.permute.xlu0 %1065
      %1069 = vset.pattern.permute.xlu0 0
      %1070 = vperm.xlu0 %1069, %v911
      %v1071 = vpop.permute.xlu0 %1070
      %v1074 = vlaneseq
      %v1075 = vshrl.u32 %v1074, 7
      %v1076 = vsub.s32 0, %v1075
      %v1077 = vrot.slane %v912, %v1076
      %v1079 = vmul.f32 %v916, %v1077
      %v1080 = vmul.f32 %v921, %v1077
      %v1081 = vmul.f32 %v926, %v1077
      %v1082 = vmul.f32 %v931, %v1077
      %v1083 = vmul.f32 %v936, %v1077
      %v1084 = vmul.f32 %v941, %v1077
      %v1085 = vmul.f32 %v946, %v1077
      %v1086 = vmul.f32 %v951, %v1077
      %v1087 = vmul.f32 %v956, %v1077
      %v1088 = vmul.f32 %v961, %v1077
      %v1089 = vmul.f32 %v966, %v1077
      %v1090 = vmul.f32 %v971, %v1077
      %v1091 = vmul.f32 %v976, %v1077
      %v1092 = vmul.f32 %v981, %v1077
      %v1093 = vmul.f32 %v986, %v1077
      %v1094 = vmul.f32 %v991, %v1077
      %v1095 = vmul.f32 %v996, %v1077
      %v1096 = vmul.f32 %v1001, %v1077
      %v1097 = vmul.f32 %v1006, %v1077
      %v1098 = vmul.f32 %v1011, %v1077
      %v1099 = vmul.f32 %v1016, %v1077
      %v1100 = vmul.f32 %v1021, %v1077
      %v1101 = vmul.f32 %v1026, %v1077
      %v1102 = vmul.f32 %v1031, %v1077
      %v1103 = vmul.f32 %v1036, %v1077
      %v1104 = vmul.f32 %v1041, %v1077
      %v1105 = vmul.f32 %v1046, %v1077
      %v1106 = vmul.f32 %v1051, %v1077
      %v1107 = vmul.f32 %v1056, %v1077
      %v1108 = vmul.f32 %v1061, %v1077
      %v1109 = vmul.f32 %v1066, %v1077
      %v1110 = vmul.f32 %v1071, %v1077
      %1111 = vmatprep.subr.mxu0 0.0
      %1112 = vmatpush1.msra.mxu0 %v434
      %1113 = vmatprep.subr.mxu0 0.0
      %1114 = vmatpush1.msra.mxu0 %v439
      %1115 = vmatprep.subr.mxu0 0.0
      %1116 = vmatpush1.msra.mxu0 %v444
      %1117 = vmatprep.subr.mxu0 0.0
      %1118 = vmatpush1.msra.mxu0 %v449
      %1119 = vmatprep.subr.mxu0 0.0
      %1120 = vmatpush1.msra.mxu0 %v454
      %1121 = vmatprep.subr.mxu0 0.0
      %1122 = vmatpush1.msra.mxu0 %v459
      %1123 = vmatprep.subr.mxu0 0.0
      %1124 = vmatpush1.msra.mxu0 %v464
      %1125 = vmatprep.subr.mxu0 0.0
      %1126 = vmatpush1.msra.mxu0 %v469
      %1127 = vmatprep.subr.mxu0 0.0
      %1128 = vmatpush1.msra.mxu0 %v474
      %1129 = vmatprep.subr.mxu0 0.0
      %1130 = vmatpush1.msra.mxu0 %v479
      %1131 = vmatprep.subr.mxu0 0.0
      %1132 = vmatpush1.msra.mxu0 %v484
      %1133 = vmatprep.subr.mxu0 0.0
      %1134 = vmatpush1.msra.mxu0 %v489
      %1135 = vmatprep.subr.mxu0 0.0
      %1136 = vmatpush1.msra.mxu0 %v494
      %1137 = vmatprep.subr.mxu0 0.0
      %1138 = vmatpush1.msra.mxu0 %v499
      %1139 = vmatprep.subr.mxu0 0.0
      %1140 = vmatpush1.msra.mxu0 %v504
      %1141 = vmatprep.subr.mxu0 0.0
      %1142 = vmatpush1.msra.mxu0 %v509
      %1143 = vmatprep.subr.mxu0 0.0
      %1144 = vmatpush1.msra.mxu0 %v514
      %1145 = vmatprep.subr.mxu0 0.0
      %1146 = vmatpush1.msra.mxu0 %v519
      %1147 = vmatprep.subr.mxu0 0.0
      %1148 = vmatpush1.msra.mxu0 %v524
      %1149 = vmatprep.subr.mxu0 0.0
      %1150 = vmatpush1.msra.mxu0 %v529
      %1151 = vmatprep.subr.mxu0 0.0
      %1152 = vmatpush1.msra.mxu0 %v534
      %1153 = vmatprep.subr.mxu0 0.0
      %1154 = vmatpush1.msra.mxu0 %v539
      %1155 = vmatprep.subr.mxu0 0.0
      %1156 = vmatpush1.msra.mxu0 %v544
      %1157 = vmatprep.subr.mxu0 0.0
      %1158 = vmatpush1.msra.mxu0 %v549
      %1159 = vmatprep.subr.mxu0 0.0
      %1160 = vmatpush1.msra.mxu0 %v554
      %1161 = vmatprep.subr.mxu0 0.0
      %1162 = vmatpush1.msra.mxu0 %v559
      %1163 = vmatprep.subr.mxu0 0.0
      %1164 = vmatpush1.msra.mxu0 %v564
      %1165 = vmatprep.subr.mxu0 0.0
      %1166 = vmatpush1.msra.mxu0 %v569
      %1167 = vmatprep.subr.mxu0 0.0
      %1168 = vmatpush1.msra.mxu0 %v574
      %1169 = vmatprep.subr.mxu0 0.0
      %1170 = vmatpush1.msra.mxu0 %v579
      %1171 = vmatprep.subr.mxu0 0.0
      %1172 = vmatpush1.msra.mxu0 %v584
      %1173 = vmatprep.subr.mxu0 0.0
      %1174 = vmatpush1.msra.mxu0 %v589
      %1175 = vmatprep.mubr.f32.mxu0 %v753
      %1176 = vmatmul.mubr.f32.gmra.mrb[0].mxu0 %v752
      %v1177 = vpop.f32.mrb[0].mxu0
      %v1178 = vadd.f32 %v1079, %v1177
      %v1179 = vpop.f32.mrb[0].mxu0
      %1180 = vmatprep.mubr.f32.mxu0 %v757
      %1181 = vmatmul.mubr.f32.gmra.mrb[0].mxu0 %v756
      %v1182 = vpop.f32.mrb[0].mxu0
      %v1183 = vadd.f32 %v1080, %v1182
      %v1184 = vpop.f32.mrb[0].mxu0
      %1185 = vmatprep.mubr.f32.mxu0 %v761
      %1186 = vmatmul.mubr.f32.gmra.mrb[0].mxu0 %v760
      %v1187 = vpop.f32.mrb[0].mxu0
      %v1188 = vadd.f32 %v1081, %v1187
      %v1189 = vpop.f32.mrb[0].mxu0
      %1190 = vmatprep.mubr.f32.mxu0 %v765
      %1191 = vmatmul.mubr.f32.gmra.mrb[0].mxu0 %v764
      %v1192 = vpop.f32.mrb[0].mxu0
      %v1193 = vadd.f32 %v1082, %v1192
      %v1194 = vpop.f32.mrb[0].mxu0
      %1195 = vmatprep.mubr.f32.mxu0 %v769
      %1196 = vmatmul.mubr.f32.gmra.mrb[0].mxu0 %v768
      %v1197 = vpop.f32.mrb[0].mxu0
      %v1198 = vadd.f32 %v1083, %v1197
      %v1199 = vpop.f32.mrb[0].mxu0
      %1200 = vmatprep.mubr.f32.mxu0 %v773
      %1201 = vmatmul.mubr.f32.gmra.mrb[0].mxu0 %v772
      %v1202 = vpop.f32.mrb[0].mxu0
      %v1203 = vadd.f32 %v1084, %v1202
      %v1204 = vpop.f32.mrb[0].mxu0
      %1205 = vmatprep.mubr.f32.mxu0 %v777
      %1206 = vmatmul.mubr.f32.gmra.mrb[0].mxu0 %v776
      %v1207 = vpop.f32.mrb[0].mxu0
      %v1208 = vadd.f32 %v1085, %v1207
      %v1209 = vpop.f32.mrb[0].mxu0
      %1210 = vmatprep.mubr.f32.mxu0 %v781
      %1211 = vmatmul.mubr.f32.gmra.mrb[0].mxu0 %v780
      %v1212 = vpop.f32.mrb[0].mxu0
      %v1213 = vadd.f32 %v1086, %v1212
      %v1214 = vpop.f32.mrb[0].mxu0
      %1215 = vmatprep.mubr.f32.mxu0 %v785
      %1216 = vmatmul.mubr.f32.gmra.mrb[0].mxu0 %v784
      %v1217 = vpop.f32.mrb[0].mxu0
      %v1218 = vadd.f32 %v1087, %v1217
      %v1219 = vpop.f32.mrb[0].mxu0
      %1220 = vmatprep.mubr.f32.mxu0 %v789
      %1221 = vmatmul.mubr.f32.gmra.mrb[0].mxu0 %v788
      %v1222 = vpop.f32.mrb[0].mxu0
      %v1223 = vadd.f32 %v1088, %v1222
      %v1224 = vpop.f32.mrb[0].mxu0
      %1225 = vmatprep.mubr.f32.mxu0 %v793
      %1226 = vmatmul.mubr.f32.gmra.mrb[0].mxu0 %v792
      %v1227 = vpop.f32.mrb[0].mxu0
      %v1228 = vadd.f32 %v1089, %v1227
      %v1229 = vpop.f32.mrb[0].mxu0
      %1230 = vmatprep.mubr.f32.mxu0 %v797
      %1231 = vmatmul.mubr.f32.gmra.mrb[0].mxu0 %v796
      %v1232 = vpop.f32.mrb[0].mxu0
      %v1233 = vadd.f32 %v1090, %v1232
      %v1234 = vpop.f32.mrb[0].mxu0
      %1235 = vmatprep.mubr.f32.mxu0 %v801
      %1236 = vmatmul.mubr.f32.gmra.mrb[0].mxu0 %v800
      %v1237 = vpop.f32.mrb[0].mxu0
      %v1238 = vadd.f32 %v1091, %v1237
      %v1239 = vpop.f32.mrb[0].mxu0
      %1240 = vmatprep.mubr.f32.mxu0 %v805
      %1241 = vmatmul.mubr.f32.gmra.mrb[0].mxu0 %v804
      %v1242 = vpop.f32.mrb[0].mxu0
      %v1243 = vadd.f32 %v1092, %v1242
      %v1244 = vpop.f32.mrb[0].mxu0
      %1245 = vmatprep.mubr.f32.mxu0 %v809
      %1246 = vmatmul.mubr.f32.gmra.mrb[0].mxu0 %v808
      %v1247 = vpop.f32.mrb[0].mxu0
      %v1248 = vadd.f32 %v1093, %v1247
      %v1249 = vpop.f32.mrb[0].mxu0
      %1250 = vmatprep.mubr.f32.mxu0 %v813
      %1251 = vmatmul.mubr.f32.gmra.mrb[0].mxu0 %v812
      %v1252 = vpop.f32.mrb[0].mxu0
      %v1253 = vadd.f32 %v1094, %v1252
      %v1254 = vpop.f32.mrb[0].mxu0
      %1255 = vmatprep.mubr.f32.mxu0 %v817
      %1256 = vmatmul.mubr.f32.gmra.mrb[0].mxu0 %v816
      %v1257 = vpop.f32.mrb[0].mxu0
      %v1258 = vadd.f32 %v1095, %v1257
      %v1259 = vpop.f32.mrb[0].mxu0
      %1260 = vmatprep.mubr.f32.mxu0 %v821
      %1261 = vmatmul.mubr.f32.gmra.mrb[0].mxu0 %v820
      %v1262 = vpop.f32.mrb[0].mxu0
      %v1263 = vadd.f32 %v1096, %v1262
      %v1264 = vpop.f32.mrb[0].mxu0
      %1265 = vmatprep.mubr.f32.mxu0 %v825
      %1266 = vmatmul.mubr.f32.gmra.mrb[0].mxu0 %v824
      %v1267 = vpop.f32.mrb[0].mxu0
      %v1268 = vadd.f32 %v1097, %v1267
      %v1269 = vpop.f32.mrb[0].mxu0
      %1270 = vmatprep.mubr.f32.mxu0 %v829
      %1271 = vmatmul.mubr.f32.gmra.mrb[0].mxu0 %v828
      %v1272 = vpop.f32.mrb[0].mxu0
      %v1273 = vadd.f32 %v1098, %v1272
      %v1274 = vpop.f32.mrb[0].mxu0
      %1275 = vmatprep.mubr.f32.mxu0 %v833
      %1276 = vmatmul.mubr.f32.gmra.mrb[0].mxu0 %v832
      %v1277 = vpop.f32.mrb[0].mxu0
      %v1278 = vadd.f32 %v1099, %v1277
      %v1279 = vpop.f32.mrb[0].mxu0
      %1280 = vmatprep.mubr.f32.mxu0 %v837
      %1281 = vmatmul.mubr.f32.gmra.mrb[0].mxu0 %v836
      %v1282 = vpop.f32.mrb[0].mxu0
      %v1283 = vadd.f32 %v1100, %v1282
      %v1284 = vpop.f32.mrb[0].mxu0
      %1285 = vmatprep.mubr.f32.mxu0 %v841
      %1286 = vmatmul.mubr.f32.gmra.mrb[0].mxu0 %v840
      %v1287 = vpop.f32.mrb[0].mxu0
      %v1288 = vadd.f32 %v1101, %v1287
      %v1289 = vpop.f32.mrb[0].mxu0
      %1290 = vmatprep.mubr.f32.mxu0 %v845
      %1291 = vmatmul.mubr.f32.gmra.mrb[0].mxu0 %v844
      %v1292 = vpop.f32.mrb[0].mxu0
      %v1293 = vadd.f32 %v1102, %v1292
      %v1294 = vpop.f32.mrb[0].mxu0
      %1295 = vmatprep.mubr.f32.mxu0 %v849
      %1296 = vmatmul.mubr.f32.gmra.mrb[0].mxu0 %v848
      %v1297 = vpop.f32.mrb[0].mxu0
      %v1298 = vadd.f32 %v1103, %v1297
      %v1299 = vpop.f32.mrb[0].mxu0
      %1300 = vmatprep.mubr.f32.mxu0 %v853
      %1301 = vmatmul.mubr.f32.gmra.mrb[0].mxu0 %v852
      %v1302 = vpop.f32.mrb[0].mxu0
      %v1303 = vadd.f32 %v1104, %v1302
      %v1304 = vpop.f32.mrb[0].mxu0
      %1305 = vmatprep.mubr.f32.mxu0 %v857
      %1306 = vmatmul.mubr.f32.gmra.mrb[0].mxu0 %v856
      %v1307 = vpop.f32.mrb[0].mxu0
      %v1308 = vadd.f32 %v1105, %v1307
      %v1309 = vpop.f32.mrb[0].mxu0
      %1310 = vmatprep.mubr.f32.mxu0 %v861
      %1311 = vmatmul.mubr.f32.gmra.mrb[0].mxu0 %v860
      %v1312 = vpop.f32.mrb[0].mxu0
      %v1313 = vadd.f32 %v1106, %v1312
      %v1314 = vpop.f32.mrb[0].mxu0
      %1315 = vmatprep.mubr.f32.mxu0 %v865
      %1316 = vmatmul.mubr.f32.gmra.mrb[0].mxu0 %v864
      %v1317 = vpop.f32.mrb[0].mxu0
      %v1318 = vadd.f32 %v1107, %v1317
      %v1319 = vpop.f32.mrb[0].mxu0
      %1320 = vmatprep.mubr.f32.mxu0 %v869
      %1321 = vmatmul.mubr.f32.gmra.mrb[0].mxu0 %v868
      %v1322 = vpop.f32.mrb[0].mxu0
      %v1323 = vadd.f32 %v1108, %v1322
      %v1324 = vpop.f32.mrb[0].mxu0
      %1325 = vmatprep.mubr.f32.mxu0 %v873
      %1326 = vmatmul.mubr.f32.gmra.mrb[0].mxu0 %v872
      %v1327 = vpop.f32.mrb[0].mxu0
      %v1328 = vadd.f32 %v1109, %v1327
      %v1329 = vpop.f32.mrb[0].mxu0
      %1330 = vmatprep.mubr.f32.mxu0 %v877
      %1331 = vmatmul.mubr.f32.gmra.mrb[0].mxu0 %v876
      %v1332 = vpop.f32.mrb[0].mxu0
      %v1333 = vadd.f32 %v1110, %v1332
      %v1334 = vpop.f32.mrb[0].mxu0
      %1335 = vdwg.mxu0
      %1336 = vmatprep.subr.mxu0 0.0
      %1337 = vmatpush1.msra.mxu0 %v594
      %1338 = vmatprep.subr.mxu0 0.0
      %1339 = vmatpush1.msra.mxu0 %v599
      %1340 = vmatprep.subr.mxu0 0.0
      %1341 = vmatpush1.msra.mxu0 %v604
      %1342 = vmatprep.subr.mxu0 0.0
      %1343 = vmatpush1.msra.mxu0 %v609
      %1344 = vmatprep.subr.mxu0 0.0
      %1345 = vmatpush1.msra.mxu0 %v614
      %1346 = vmatprep.subr.mxu0 0.0
      %1347 = vmatpush1.msra.mxu0 %v619
      %1348 = vmatprep.subr.mxu0 0.0
      %1349 = vmatpush1.msra.mxu0 %v624
      %1350 = vmatprep.subr.mxu0 0.0
      %1351 = vmatpush1.msra.mxu0 %v629
      %1352 = vmatprep.subr.mxu0 0.0
      %1353 = vmatpush1.msra.mxu0 %v634
      %1354 = vmatprep.subr.mxu0 0.0
      %1355 = vmatpush1.msra.mxu0 %v639
      %1356 = vmatprep.subr.mxu0 0.0
      %1357 = vmatpush1.msra.mxu0 %v644
      %1358 = vmatprep.subr.mxu0 0.0
      %1359 = vmatpush1.msra.mxu0 %v649
      %1360 = vmatprep.subr.mxu0 0.0
      %1361 = vmatpush1.msra.mxu0 %v654
      %1362 = vmatprep.subr.mxu0 0.0
      %1363 = vmatpush1.msra.mxu0 %v659
      %1364 = vmatprep.subr.mxu0 0.0
      %1365 = vmatpush1.msra.mxu0 %v664
      %1366 = vmatprep.subr.mxu0 0.0
      %1367 = vmatpush1.msra.mxu0 %v669
      %1368 = vmatprep.subr.mxu0 0.0
      %1369 = vmatpush1.msra.mxu0 %v674
      %1370 = vmatprep.subr.mxu0 0.0
      %1371 = vmatpush1.msra.mxu0 %v679
      %1372 = vmatprep.subr.mxu0 0.0
      %1373 = vmatpush1.msra.mxu0 %v684
      %1374 = vmatprep.subr.mxu0 0.0
      %1375 = vmatpush1.msra.mxu0 %v689
      %1376 = vmatprep.subr.mxu0 0.0
      %1377 = vmatpush1.msra.mxu0 %v694
      %1378 = vmatprep.subr.mxu0 0.0
      %1379 = vmatpush1.msra.mxu0 %v699
      %1380 = vmatprep.subr.mxu0 0.0
      %1381 = vmatpush1.msra.mxu0 %v704
      %1382 = vmatprep.subr.mxu0 0.0
      %1383 = vmatpush1.msra.mxu0 %v709
      %1384 = vmatprep.subr.mxu0 0.0
      %1385 = vmatpush1.msra.mxu0 %v714
      %1386 = vmatprep.subr.mxu0 0.0
      %1387 = vmatpush1.msra.mxu0 %v719
      %1388 = vmatprep.subr.mxu0 0.0
      %1389 = vmatpush1.msra.mxu0 %v724
      %1390 = vmatprep.subr.mxu0 0.0
      %1391 = vmatpush1.msra.mxu0 %v729
      %1392 = vmatprep.subr.mxu0 0.0
      %1393 = vmatpush1.msra.mxu0 %v734
      %1394 = vmatprep.subr.mxu0 0.0
      %1395 = vmatpush1.msra.mxu0 %v739
      %1396 = vmatprep.subr.mxu0 0.0
      %1397 = vmatpush1.msra.mxu0 %v744
      %1398 = vmatprep.subr.mxu0 0.0
      %1399 = vmatpush1.msra.mxu0 %v749
      %1400 = vmatprep.mubr.f32.mxu0 %v755
      %1401 = vmatmul.mubr.f32.gmra.mrb[0].mxu0 %v754
      %v1402 = vpop.f32.mrb[0].mxu0
      %v1403 = vadd.f32 %v1178, %v1402
      %v1404 = vpop.f32.mrb[0].mxu0
      %1405 = vmatprep.mubr.f32.mxu0 %v759
      %1406 = vmatmul.mubr.f32.gmra.mrb[0].mxu0 %v758
      %v1407 = vpop.f32.mrb[0].mxu0
      %v1408 = vadd.f32 %v1183, %v1407
      %v1409 = vpop.f32.mrb[0].mxu0
      %1410 = vmatprep.mubr.f32.mxu0 %v763
      %1411 = vmatmul.mubr.f32.gmra.mrb[0].mxu0 %v762
      %v1412 = vpop.f32.mrb[0].mxu0
      %v1413 = vadd.f32 %v1188, %v1412
      %v1414 = vpop.f32.mrb[0].mxu0
      %1415 = vmatprep.mubr.f32.mxu0 %v767
      %1416 = vmatmul.mubr.f32.gmra.mrb[0].mxu0 %v766
      %v1417 = vpop.f32.mrb[0].mxu0
      %v1418 = vadd.f32 %v1193, %v1417
      %v1419 = vpop.f32.mrb[0].mxu0
      %1420 = vmatprep.mubr.f32.mxu0 %v771
      %1421 = vmatmul.mubr.f32.gmra.mrb[0].mxu0 %v770
      %v1422 = vpop.f32.mrb[0].mxu0
      %v1423 = vadd.f32 %v1198, %v1422
      %v1424 = vpop.f32.mrb[0].mxu0
      %1425 = vmatprep.mubr.f32.mxu0 %v775
      %1426 = vmatmul.mubr.f32.gmra.mrb[0].mxu0 %v774
      %v1427 = vpop.f32.mrb[0].mxu0
      %v1428 = vadd.f32 %v1203, %v1427
      %v1429 = vpop.f32.mrb[0].mxu0
      %1430 = vmatprep.mubr.f32.mxu0 %v779
      %1431 = vmatmul.mubr.f32.gmra.mrb[0].mxu0 %v778
      %v1432 = vpop.f32.mrb[0].mxu0
      %v1433 = vadd.f32 %v1208, %v1432
      %v1434 = vpop.f32.mrb[0].mxu0
      %1435 = vmatprep.mubr.f32.mxu0 %v783
      %1436 = vmatmul.mubr.f32.gmra.mrb[0].mxu0 %v782
      %v1437 = vpop.f32.mrb[0].mxu0
      %v1438 = vadd.f32 %v1213, %v1437
      %v1439 = vpop.f32.mrb[0].mxu0
      %1440 = vmatprep.mubr.f32.mxu0 %v787
      %1441 = vmatmul.mubr.f32.gmra.mrb[0].mxu0 %v786
      %v1442 = vpop.f32.mrb[0].mxu0
      %v1443 = vadd.f32 %v1218, %v1442
      %v1444 = vpop.f32.mrb[0].mxu0
      %1445 = vmatprep.mubr.f32.mxu0 %v791
      %1446 = vmatmul.mubr.f32.gmra.mrb[0].mxu0 %v790
      %v1447 = vpop.f32.mrb[0].mxu0
      %v1448 = vadd.f32 %v1223, %v1447
      %v1449 = vpop.f32.mrb[0].mxu0
      %1450 = vmatprep.mubr.f32.mxu0 %v795
      %1451 = vmatmul.mubr.f32.gmra.mrb[0].mxu0 %v794
      %v1452 = vpop.f32.mrb[0].mxu0
      %v1453 = vadd.f32 %v1228, %v1452
      %v1454 = vpop.f32.mrb[0].mxu0
      %1455 = vmatprep.mubr.f32.mxu0 %v799
      %1456 = vmatmul.mubr.f32.gmra.mrb[0].mxu0 %v798
      %v1457 = vpop.f32.mrb[0].mxu0
      %v1458 = vadd.f32 %v1233, %v1457
      %v1459 = vpop.f32.mrb[0].mxu0
      %1460 = vmatprep.mubr.f32.mxu0 %v803
      %1461 = vmatmul.mubr.f32.gmra.mrb[0].mxu0 %v802
      %v1462 = vpop.f32.mrb[0].mxu0
      %v1463 = vadd.f32 %v1238, %v1462
      %v1464 = vpop.f32.mrb[0].mxu0
      %1465 = vmatprep.mubr.f32.mxu0 %v807
      %1466 = vmatmul.mubr.f32.gmra.mrb[0].mxu0 %v806
      %v1467 = vpop.f32.mrb[0].mxu0
      %v1468 = vadd.f32 %v1243, %v1467
      %v1469 = vpop.f32.mrb[0].mxu0
      %1470 = vmatprep.mubr.f32.mxu0 %v811
      %1471 = vmatmul.mubr.f32.gmra.mrb[0].mxu0 %v810
      %v1472 = vpop.f32.mrb[0].mxu0
      %v1473 = vadd.f32 %v1248, %v1472
      %v1474 = vpop.f32.mrb[0].mxu0
      %1475 = vmatprep.mubr.f32.mxu0 %v815
      %1476 = vmatmul.mubr.f32.gmra.mrb[0].mxu0 %v814
      %v1477 = vpop.f32.mrb[0].mxu0
      %v1478 = vadd.f32 %v1253, %v1477
      %v1479 = vpop.f32.mrb[0].mxu0
      %1480 = vmatprep.mubr.f32.mxu0 %v819
      %1481 = vmatmul.mubr.f32.gmra.mrb[0].mxu0 %v818
      %v1482 = vpop.f32.mrb[0].mxu0
      %v1483 = vadd.f32 %v1258, %v1482
      %v1484 = vpop.f32.mrb[0].mxu0
      %1485 = vmatprep.mubr.f32.mxu0 %v823
      %1486 = vmatmul.mubr.f32.gmra.mrb[0].mxu0 %v822
      %v1487 = vpop.f32.mrb[0].mxu0
      %v1488 = vadd.f32 %v1263, %v1487
      %v1489 = vpop.f32.mrb[0].mxu0
      %1490 = vmatprep.mubr.f32.mxu0 %v827
      %1491 = vmatmul.mubr.f32.gmra.mrb[0].mxu0 %v826
      %v1492 = vpop.f32.mrb[0].mxu0
      %v1493 = vadd.f32 %v1268, %v1492
      %v1494 = vpop.f32.mrb[0].mxu0
      %1495 = vmatprep.mubr.f32.mxu0 %v831
      %1496 = vmatmul.mubr.f32.gmra.mrb[0].mxu0 %v830
      %v1497 = vpop.f32.mrb[0].mxu0
      %v1498 = vadd.f32 %v1273, %v1497
      %v1499 = vpop.f32.mrb[0].mxu0
      %1500 = vmatprep.mubr.f32.mxu0 %v835
      %1501 = vmatmul.mubr.f32.gmra.mrb[0].mxu0 %v834
      %v1502 = vpop.f32.mrb[0].mxu0
      %v1503 = vadd.f32 %v1278, %v1502
      %v1504 = vpop.f32.mrb[0].mxu0
      %1505 = vmatprep.mubr.f32.mxu0 %v839
      %1506 = vmatmul.mubr.f32.gmra.mrb[0].mxu0 %v838
      %v1507 = vpop.f32.mrb[0].mxu0
      %v1508 = vadd.f32 %v1283, %v1507
      %v1509 = vpop.f32.mrb[0].mxu0
      %1510 = vmatprep.mubr.f32.mxu0 %v843
      %1511 = vmatmul.mubr.f32.gmra.mrb[0].mxu0 %v842
      %v1512 = vpop.f32.mrb[0].mxu0
      %v1513 = vadd.f32 %v1288, %v1512
      %v1514 = vpop.f32.mrb[0].mxu0
      %1515 = vmatprep.mubr.f32.mxu0 %v847
      %1516 = vmatmul.mubr.f32.gmra.mrb[0].mxu0 %v846
      %v1517 = vpop.f32.mrb[0].mxu0
      %v1518 = vadd.f32 %v1293, %v1517
      %v1519 = vpop.f32.mrb[0].mxu0
      %1520 = vmatprep.mubr.f32.mxu0 %v851
      %1521 = vmatmul.mubr.f32.gmra.mrb[0].mxu0 %v850
      %v1522 = vpop.f32.mrb[0].mxu0
      %v1523 = vadd.f32 %v1298, %v1522
      %v1524 = vpop.f32.mrb[0].mxu0
      %1525 = vmatprep.mubr.f32.mxu0 %v855
      %1526 = vmatmul.mubr.f32.gmra.mrb[0].mxu0 %v854
      %v1527 = vpop.f32.mrb[0].mxu0
      %v1528 = vadd.f32 %v1303, %v1527
      %v1529 = vpop.f32.mrb[0].mxu0
      %1530 = vmatprep.mubr.f32.mxu0 %v859
      %1531 = vmatmul.mubr.f32.gmra.mrb[0].mxu0 %v858
      %v1532 = vpop.f32.mrb[0].mxu0
      %v1533 = vadd.f32 %v1308, %v1532
      %v1534 = vpop.f32.mrb[0].mxu0
      %1535 = vmatprep.mubr.f32.mxu0 %v863
      %1536 = vmatmul.mubr.f32.gmra.mrb[0].mxu0 %v862
      %v1537 = vpop.f32.mrb[0].mxu0
      %v1538 = vadd.f32 %v1313, %v1537
      %v1539 = vpop.f32.mrb[0].mxu0
      %1540 = vmatprep.mubr.f32.mxu0 %v867
      %1541 = vmatmul.mubr.f32.gmra.mrb[0].mxu0 %v866
      %v1542 = vpop.f32.mrb[0].mxu0
      %v1543 = vadd.f32 %v1318, %v1542
      %v1544 = vpop.f32.mrb[0].mxu0
      %1545 = vmatprep.mubr.f32.mxu0 %v871
      %1546 = vmatmul.mubr.f32.gmra.mrb[0].mxu0 %v870
      %v1547 = vpop.f32.mrb[0].mxu0
      %v1548 = vadd.f32 %v1323, %v1547
      %v1549 = vpop.f32.mrb[0].mxu0
      %1550 = vmatprep.mubr.f32.mxu0 %v875
      %1551 = vmatmul.mubr.f32.gmra.mrb[0].mxu0 %v874
      %v1552 = vpop.f32.mrb[0].mxu0
      %v1553 = vadd.f32 %v1328, %v1552
      %v1554 = vpop.f32.mrb[0].mxu0
      %1555 = vmatprep.mubr.f32.mxu0 %v879
      %1556 = vmatmul.mubr.f32.gmra.mrb[0].mxu0 %v878
      %v1557 = vpop.f32.mrb[0].mxu0
      %v1558 = vadd.f32 %v1333, %v1557
      %v1559 = vpop.f32.mrb[0].mxu0
      %1560 = vdwg.mxu0
      %v1561 = vld [vmem:[%s5] sm:$0x1]
      %v1563 = vlaneseq
      %v1564 = vshrl.u32 %v1563, 7
      %v1565 = vsub.s32 0, %v1564
      %v1566 = vrot.slane %v1561, %v1565
      %v1568 = vadd.f32 %v1403, %v1566
      %v1569 = vadd.f32 %v1408, %v1566
      %v1570 = vadd.f32 %v1413, %v1566
      %v1571 = vadd.f32 %v1418, %v1566
      %v1572 = vadd.f32 %v1423, %v1566
      %v1573 = vadd.f32 %v1428, %v1566
      %v1574 = vadd.f32 %v1433, %v1566
      %v1575 = vadd.f32 %v1438, %v1566
      %v1576 = vadd.f32 %v1443, %v1566
      %v1577 = vadd.f32 %v1448, %v1566
      %v1578 = vadd.f32 %v1453, %v1566
      %v1579 = vadd.f32 %v1458, %v1566
      %v1580 = vadd.f32 %v1463, %v1566
      %v1581 = vadd.f32 %v1468, %v1566
      %v1582 = vadd.f32 %v1473, %v1566
      %v1583 = vadd.f32 %v1478, %v1566
      %v1584 = vadd.f32 %v1483, %v1566
      %v1585 = vadd.f32 %v1488, %v1566
      %v1586 = vadd.f32 %v1493, %v1566
      %v1587 = vadd.f32 %v1498, %v1566
      %v1588 = vadd.f32 %v1503, %v1566
      %v1589 = vadd.f32 %v1508, %v1566
      %v1590 = vadd.f32 %v1513, %v1566
      %v1591 = vadd.f32 %v1518, %v1566
      %v1592 = vadd.f32 %v1523, %v1566
      %v1593 = vadd.f32 %v1528, %v1566
      %v1594 = vadd.f32 %v1533, %v1566
      %v1595 = vadd.f32 %v1538, %v1566
      %v1596 = vadd.f32 %v1543, %v1566
      %v1597 = vadd.f32 %v1548, %v1566
      %v1598 = vadd.f32 %v1553, %v1566
      %v1599 = vadd.f32 %v1558, %v1566
      %1600 = vst [vmem:[%s278] sm:$0xff] %v1568
      %1601 = vst [vmem:[%s278 + $0x8] sm:$0xff] %v1569
      %1602 = vst [vmem:[%s278 + $0x10] sm:$0xff] %v1570
      %1603 = vst [vmem:[%s278 + $0x18] sm:$0xff] %v1571
      %1604 = vst [vmem:[%s278 + $0x20] sm:$0xff] %v1572
      %1605 = vst [vmem:[%s278 + $0x28] sm:$0xff] %v1573
      %1606 = vst [vmem:[%s278 + $0x30] sm:$0xff] %v1574
      %1607 = vst [vmem:[%s278 + $0x38] sm:$0xff] %v1575
      %1608 = vst [vmem:[%s278 + $0x40] sm:$0xff] %v1576
      %1609 = vst [vmem:[%s278 + $0x48] sm:$0xff] %v1577
      %1610 = vst [vmem:[%s278 + $0x50] sm:$0xff] %v1578
      %1611 = vst [vmem:[%s278 + $0x58] sm:$0xff] %v1579
      %1612 = vst [vmem:[%s278 + $0x60] sm:$0xff] %v1580
      %1613 = vst [vmem:[%s278 + $0x68] sm:$0xff] %v1581
      %1614 = vst [vmem:[%s278 + $0x70] sm:$0xff] %v1582
      %1615 = vst [vmem:[%s278 + $0x78] sm:$0xff] %v1583
      %1616 = vst [vmem:[%s278 + $0x80] sm:$0xff] %v1584
      %1617 = vst [vmem:[%s278 + $0x88] sm:$0xff] %v1585
      %1618 = vst [vmem:[%s278 + $0x90] sm:$0xff] %v1586
      %1619 = vst [vmem:[%s278 + $0x98] sm:$0xff] %v1587
      %1620 = vst [vmem:[%s278 + $0xa0] sm:$0xff] %v1588
      %1621 = vst [vmem:[%s278 + $0xa8] sm:$0xff] %v1589
      %1622 = vst [vmem:[%s278 + $0xb0] sm:$0xff] %v1590
      %1623 = vst [vmem:[%s278 + $0xb8] sm:$0xff] %v1591
      %1624 = vst [vmem:[%s278 + $0xc0] sm:$0xff] %v1592
      %1625 = vst [vmem:[%s278 + $0xc8] sm:$0xff] %v1593
      %1626 = vst [vmem:[%s278 + $0xd0] sm:$0xff] %v1594
      %1627 = vst [vmem:[%s278 + $0xd8] sm:$0xff] %v1595
      %1628 = vst [vmem:[%s278 + $0xe0] sm:$0xff] %v1596
      %1629 = vst [vmem:[%s278 + $0xe8] sm:$0xff] %v1597
      %1630 = vst [vmem:[%s278 + $0xf0] sm:$0xff] %v1598
      %1631 = vst [vmem:[%s278 + $0xf8] sm:$0xff] %v1599
      %s1632 = smul.u32 32, %s17
      %p1633 = scmp.lt.s32.totalorder %s1632, 223
      %s1634 = scalar_select %p1633, %s1632, 223
      %s1635 = smul.addr %s1634, 8
      %s1636 = scalar_lea.vmem %s6, %s1635
      // Predicated region
      $region45: #{gcn_forward.1} parent=43 // pred_check
        %p1637 = pneg %p171
      $region46: #{gcn_forward.1} parent=43 // pred_check_branch
        %1639 = sbr.rel (%p1637) target = $region48
      $region47: #{gcn_forward.1} parent=43 // pred_region
        %s1640 = smul.u32 32, %s17
      $region48: #{gcn_forward.1} parent=43 // pred_fallthru
        _
    $region44: #{gcn_forward.1} parent=5 // pred_fallthru
      _
    %p1641 = scmp.le.s32.totalorder 2, %s12
    // Predicated region
    $region49: #{gcn_forward.1} parent=5 // pred_check
      %p1642 = pneg %p1641
    $region50: #{gcn_forward.1} parent=5 // pred_check_branch
      %1644 = sbr.rel (%p1642) target = $region52
    $region51: #{gcn_forward.1} parent=5 // pred_region
      %s1645 = ssub.s32 %s12, 2
      // Predicated region
      $region53: #{gcn_forward.1} parent=51 // pred_check
        %p1646 = pneg %p177
      $region54: #{gcn_forward.1} parent=51 // pred_check_branch
        %1648 = sbr.rel (%p1646) target = $region56
      $region55: #{gcn_forward.1} parent=51 // pred_region
        %s1649 = smul.u32 32, %s18
        %p1650 = scmp.lt.s32.totalorder %s1649, 223
        %s1651 = scalar_select %p1650, %s1649, 223
        %s1652 = smul.addr %s1651, 8
        %s1653 = scalar_lea.vmem %s6, %s1652
      $region56: #{gcn_forward.1} parent=51 // pred_fallthru
        _
    $region52: #{gcn_forward.1} parent=5 // pred_fallthru
      _
  $region6: #{gcn_forward.1} parent=0 // loop_footer
    %s16 = sadd.s32 1, %s12
  $region7: #{gcn_forward.1} parent=0 // loop_footer_branch
    %11 = sbr.rel target = $region3
  $region8: #{gcn_forward.1} parent=0 // loop_exit
    _

</llo_original>
